<compile_context>
chip_gen: v7x
topology: tpu7x:2x2x1
jax: 0.10.0
libtpu: 0.0.40
codegen_flags: <defaults>
</compile_context>

<pallas_src>
import functools

import jax
import jax.numpy as jnp
from jax import lax
from jax.experimental import pallas as pl
from jax.experimental.pallas import tpu as pltpu


def _perforant_kernel(te, x_resident, w_resident,             # static (partial-bound)
                      lr_ref, x_ref, dg_ref, w_ref,            # inputs
                      pc_ref, loss_ref, wnew_ref,              # outputs
                      pc_acc, g_acc, scale_acc):               # VMEM scratch
    p = pl.program_id(0)            # phase: 0 = projection + loss, 1 = weight update
    e = pl.program_id(1)            # E-chunk index
    ne = pl.num_programs(1)
    lr = lr_ref[0, 0]               # runtime scalar from SMEM

    if x_resident:                  # resident (B,E) window -> slice the chunk
        x_blk = x_ref[:, pl.ds(pl.multiple_of(e * te, 128), te)]
    else:                           # streamed (B,TE) window
        x_blk = x_ref[...]
    if w_resident:                  # resident (C,E) window -> slice the chunk
        w_blk = w_ref[:, pl.ds(pl.multiple_of(e * te, 128), te)]
    else:                           # streamed (C,TE) window
        w_blk = w_ref[...]

    b = x_blk.shape[0]
    inv_b = 1.0 / b

    # -------- phase 0: accumulate pre_out = x @ W^T and G = x @ x^T; loss --------
    @pl.when(p == 0)
    def _phase0():
        part = lax.dot_general(x_blk, w_blk, (((1,), (1,)), ((), ())),
                               preferred_element_type=jnp.float32)        # (B, C)
        gpart = lax.dot_general(x_blk, x_blk, (((1,), (1,)), ((), ())),
                                preferred_element_type=jnp.float32)       # (B, B)

        @pl.when(e == 0)
        def _():
            pc_acc[...] = dg_ref[...] + part        # start from dg -> builds pre_pc
            g_acc[...] = gpart
            # Defensive: the aliased W_new output block is parked at chunk 0 for
            # all of phase 0 (constant index); give it a harmless defined value
            # (its own original chunk-0 contents) so any early flush is a no-op.
            wnew_ref[...] = w_blk

        @pl.when(e > 0)
        def _():
            pc_acc[...] = pc_acc[...] + part
            g_acc[...] = g_acc[...] + gpart

        @pl.when(e == ne - 1)                        # phase-0 finalize
        def _():
            pre_pc = pc_acc[...]                     # (B, C) = dg + ec_flat @ W^T
            pc_ref[...] = pre_pc                     # pc_cue output
            # Per-row Hebbian decay factor 1 - lr*mean_b(pre_pc[:, c]) as (C, 1)
            # via a tiny MXU matmul (avoids an XLU reduce + (1,C)->(C,1) relayout).
            ones_b = jnp.ones((b, 1), dtype=jnp.float32)
            col = lax.dot_general(pre_pc, ones_b, (((0,), (0,)), ((), ())),
                                  preferred_element_type=jnp.float32)     # (C, 1)
            scale_acc[...] = 1.0 - (lr * inv_b) * col
            # Shared MSE loss via the Gram identity (dg cancels, so the ec_ca3
            # and pc_cue losses are the same scalar; no post_out matmuls needed):
            #   post_out - pre_out = (lr/B) * (G @ pre_pc - rowsum(pre_pc)*pre_out)
            pre_out = pre_pc - dg_ref[...]
            rowsum = jnp.sum(pre_pc, axis=0, keepdims=True)               # (1, C)
            gp = lax.dot_general(g_acc[...], pre_pc, (((1,), (0,)), ((), ())),
                                 preferred_element_type=jnp.float32)      # (B, C)
            delta = gp - pre_out * rowsum
            s = lr * inv_b
            loss_ref[...] = ((s * s) * jnp.mean(delta * delta)).reshape(1, 1)

    # --------------- phase 1: per-chunk weight update (stream W_new) ---------------
    @pl.when(p == 1)
    def _phase1():
        pre_pc = pc_acc[...]                          # (B, C), resident from phase 0
        # tx[c, e] = sum_b pre_pc[b, c] * x[b, e]
        tx = lax.dot_general(pre_pc, x_blk, (((0,), (0,)), ((), ())),
                             preferred_element_type=jnp.float32)          # (C, TE)
        # w_new = w*(1 - lr*mean_b(pre_pc)) + (lr/B)*tx  (== w + lr*dw, dw not built)
        wnew_ref[...] = w_blk * scale_acc[...] + (lr * inv_b) * tx


def _vmem_limit_bytes():
    """Chip-aware scoped-VMEM request: 3/4 of physical, 32..96 MiB, 48 MiB fallback."""
    cap = 64 * 1024 * 1024          # conservative default == v7x physical VMEM
    try:
        info = pltpu.get_tpu_info()
        cap = int(getattr(info, "vmem_capacity_bytes", cap))
    except Exception:
        pass
    return int(min(max(cap * 3 // 4, 32 * 1024 * 1024), 96 * 1024 * 1024))


def _plan_tiling(b, c, e_pad, vmem_limit, max_te=8192):
    """Pick (te, x_resident, w_resident) for the (padded, %128==0) width e_pad."""
    f4 = 4
    x_cost = 2 * f4 * b * e_pad          # resident x window (assume 2 buffers)
    w_cost = 2 * f4 * c * e_pad          # resident W window (assume 2 buffers)
    # Fixed residents: pc_acc + dg(2 bufs) + pc out(2 bufs), G, scale, lr/loss.
    fixed = f4 * (5 * b * c + b * b + c + 16)
    budget = max(vmem_limit - fixed - (4 << 20), 2 << 20)   # 4 MiB headroom

    w_resident = w_cost <= (budget * 2) // 3
    rem = budget - (w_cost if w_resident else 0)
    x_resident = x_cost <= rem // 3
    rem -= x_cost if x_resident else 0

    # Per-TE-column cost: streamed pipeline buffers + in-kernel (C,TE) temporaries.
    per_te = f4 * ((0 if x_resident else 2 * b)       # x double-buffered input
                   + (0 if w_resident else 2 * c)     # W double-buffered input
                   + 2 * c                            # W_new double-buffered output
                   + 2 * c)                           # tx + w_new_blk temporaries
    cap = min(max_te, e_pad, max(128, (rem // max(per_te, 1)) // 128 * 128))
    te = 128
    for cand in range(cap, 127, -128):
        if e_pad % cand == 0:
            te = cand
            break
    return te, x_resident, w_resident


@functools.partial(jax.jit, static_argnums=(4, 5, 6, 7), donate_argnums=(3,))
def _perforant_call(lr_arr, ec_flat, dg, w, te, x_resident, w_resident, vmem_limit):
    b, e_total = ec_flat.shape
    c = w.shape[0]
    ne = e_total // te
    grid = (2, ne)      # phase-major: full pre-projection/loss pass, then update pass

    if x_resident:
        x_spec = pl.BlockSpec((b, e_total), lambda p, i: (0, 0))   # fetched once
    else:
        x_spec = pl.BlockSpec((b, te), lambda p, i: (0, i))        # streamed chunks
    if w_resident:
        w_spec = pl.BlockSpec((c, e_total), lambda p, i: (0, 0))   # fetched once
    else:
        w_spec = pl.BlockSpec((c, te), lambda p, i: (0, i))        # streamed chunks

    in_specs = [
        pl.BlockSpec(memory_space=pltpu.MemorySpace.SMEM),   # lr scalar (1, 1)
        x_spec,                                              # ec_flat
        pl.BlockSpec((b, c), lambda p, i: (0, 0)),           # dg (resident)
        w_spec,                                              # W
    ]
    out_specs = [
        pl.BlockSpec((b, c), lambda p, i: (0, 0)),           # pc_cue (resident)
        pl.BlockSpec((1, 1), lambda p, i: (0, 0)),           # shared mse loss
        # Parked at chunk 0 during phase 0 (constant index, defensively written
        # with its own contents), streams E-chunks in phase 1; aliased onto W.
        pl.BlockSpec((c, te), lambda p, i: (0, i * p)),      # W_new E-chunks
    ]
    scratch = [
        pltpu.VMEM((b, c), jnp.float32),    # pre_pc accumulator
        pltpu.VMEM((b, b), jnp.float32),    # Gram matrix G = x @ x^T accumulator
        pltpu.VMEM((c, 1), jnp.float32),    # per-row scale 1 - lr*mean_b(pre_pc)
    ]
    out_shapes = (
        jax.ShapeDtypeStruct((b, c), jnp.float32),           # pc_cue
        jax.ShapeDtypeStruct((1, 1), jnp.float32),           # mse loss (ec == pc)
        jax.ShapeDtypeStruct((c, e_total), jnp.float32),     # updated weight
    )

    kernel = functools.partial(_perforant_kernel, te, x_resident, w_resident)
    return pl.pallas_call(
        kernel,
        out_shape=out_shapes,
        grid_spec=pltpu.PrefetchScalarGridSpec(
            num_scalar_prefetch=0,
            grid=grid,
            in_specs=in_specs,
            out_specs=out_specs,
            scratch_shapes=scratch),
        input_output_aliases={3: 2},        # W buffer reused in place for W_new
        compiler_params=pltpu.CompilerParams(
            dimension_semantics=("arbitrary", "arbitrary"),
            vmem_limit_bytes=int(vmem_limit)),
    )(lr_arr, ec_flat, dg, w)


def perforant_hebb_forward(ec_inputs, dg_inputs, w_ec, learning_rate,
                           max_te=8192, force_stream=False, force_te=None):
    """Returns ((pc_cue, dg_ca3_loss, ec_ca3_loss, pc_cue_loss), w_ec_updated).

    NOTE: the (possibly padded) weight buffer handed to the kernel is donated
    and updated in place (input_output_aliases); do not reuse the passed-in
    weight array after this call.
    """
    b = ec_inputs.shape[0]
    ec_flat = jnp.reshape(ec_inputs, (b, -1)).astype(jnp.float32)    # (B, E)
    dg = dg_inputs.astype(jnp.float32)                               # (B, C)
    w = w_ec.astype(jnp.float32)                                     # (C, E)
    c, e_total = w.shape
    assert dg.shape == (b, c)
    assert ec_flat.shape[1] == e_total

    # Zero-pad E to a multiple of 128 (zero columns are exactly neutral for
    # pre_out, tx, W_new and the loss); the W_new padding is sliced back off.
    e_pad = max(128, ((e_total + 127) // 128) * 128)
    if e_pad != e_total:
        ec_flat = jnp.pad(ec_flat, ((0, 0), (0, e_pad - e_total)))
        w = jnp.pad(w, ((0, 0), (0, e_pad - e_total)))

    vmem_limit = _vmem_limit_bytes()
    te, x_res, w_res = _plan_tiling(b, c, e_pad, vmem_limit, max_te=max_te)
    if force_stream:                    # test hook: exercise the streamed path
        x_res = w_res = False
    if force_te is not None:            # test hook: exercise multi-chunk tiling
        assert force_te % 128 == 0 and e_pad % force_te == 0
        te = force_te
    assert e_pad % te == 0 and te % 128 == 0

    lr_arr = jnp.full((1, 1), learning_rate, dtype=jnp.float32)
    pc_cue, loss, w_new = _perforant_call(lr_arr, ec_flat, dg, w,
                                          te, x_res, w_res, vmem_limit)
    if e_pad != e_total:
        w_new = w_new[:, :e_total]

    # use_dg_ca3=False -> pre_dg_ca3_out == post_dg_ca3_out == dg_inputs -> loss 0
    dg_loss = jnp.zeros((), jnp.float32)
    shared = loss[0, 0]                 # ec_ca3_loss == pc_cue_loss (dg cancels)
    return (pc_cue, dg_loss, shared, shared), w_new


def _jax_reference(ec_inputs, dg_inputs, w_ec, lr):
    hi = lax.Precision.HIGHEST
    b = ec_inputs.shape[0]
    x = jnp.reshape(ec_inputs, (b, -1)).astype(jnp.float32)
    dg = dg_inputs.astype(jnp.float32)
    w = w_ec.astype(jnp.float32)
    pre_out = jnp.matmul(x, w.T, precision=hi)
    pre_pc = dg + pre_out
    x_t = jnp.transpose(jnp.broadcast_to(x[:, :, None], (b, x.shape[1], w.shape[0])),
                        (0, 2, 1))
    t_t = jnp.broadcast_to(pre_pc[:, :, None], (b, w.shape[0], x.shape[1]))
    dw = jnp.mean(t_t * (x_t - w[None]), axis=0)
    w_new = w + lr * dw
    post_out = jnp.matmul(x, w_new.T, precision=hi)
    post_pc = dg + post_out
    return (pre_pc,
            jnp.float32(0.0),
            jnp.mean((pre_out - post_out) ** 2),
            jnp.mean((pre_pc - post_pc) ** 2)), w_new


if __name__ == "__main__":
    key = jax.random.PRNGKey(0)
    k_ec, k_dg, k_w = jax.random.split(key, 3)

    B, C_EC, H, W_SP = 8, 4, 8, 8       # ec_inputs NCHW
    E = C_EC * H * W_SP                 # 256 (flattened EC)
    C_CA3 = 128                         # ca3 size (== dg_inputs feature dim)
    LR = 0.01

    ec_inputs = jax.random.normal(k_ec, (B, C_EC, H, W_SP), dtype=jnp.float32)
    dg_inputs = jax.random.normal(k_dg, (B, C_CA3), dtype=jnp.float32)
    # Deterministic LocalConnection init (nn.Linear-style uniform, bias=False).
    bound = 1.0 / (E ** 0.5)
    w_ec = jax.random.uniform(k_w, (C_CA3, E), minval=-bound, maxval=bound,
                              dtype=jnp.float32)

    # Pure-JAX reference of the PyTorch math, computed BEFORE any kernel call
    # (the kernel donates / in-place-updates the weight buffer it is given).
    (pc_ref, _, ecl_ref, pcl_ref), w_ref = _jax_reference(ec_inputs, dg_inputs, w_ec, LR)
    jax.block_until_ready((pc_ref, ecl_ref, pcl_ref, w_ref))

    def check(tag, outs, w_new):
        pc_cue, dg_loss, ec_loss, pc_loss = outs
        assert jnp.allclose(pc_cue, pc_ref, atol=1e-4, rtol=1e-4), tag
        assert jnp.allclose(w_new, w_ref, atol=1e-5, rtol=1e-4), tag
        assert jnp.allclose(ec_loss, ecl_ref, atol=1e-6, rtol=2e-3), tag
        assert jnp.allclose(pc_loss, pcl_ref, atol=1e-6, rtol=2e-3), tag
        assert float(dg_loss) == 0.0, tag

    # 1) Default plan (resident ec_flat + resident W at this size).
    outs1, w_new1 = perforant_hebb_forward(ec_inputs, dg_inputs, jnp.copy(w_ec), LR)
    jax.block_until_ready((outs1, w_new1))
    check("resident", outs1, w_new1)

    # 2) Forced streamed + tiled path (grid (2, 2)) to exercise the aliased,
    #    chunked W_new writeback and the E-chunk accumulation.
    outs2, w_new2 = perforant_hebb_forward(ec_inputs, dg_inputs, jnp.copy(w_ec), LR,
                                           force_stream=True, force_te=128)
    jax.block_until_ready((outs2, w_new2))
    check("streamed", outs2, w_new2)

    print("KERNEL_OK")
</pallas_src>

<mosaic_0001>
module attributes {stable_mosaic.version = 11 : i64} {
  func.func @_perforant_kernel(%arg0: i32, %arg1: i32, %arg2: memref<1x1xf32, #tpu.memory_space<smem>>, %arg3: memref<8x256xf32, #tpu.memory_space<vmem>>, %arg4: memref<8x128xf32, #tpu.memory_space<vmem>>, %arg5: memref<128x256xf32, #tpu.memory_space<vmem>>, %arg6: memref<8x128xf32, #tpu.memory_space<vmem>>, %arg7: memref<1x1xf32, #tpu.memory_space<vmem>>, %arg8: memref<128x256xf32, #tpu.memory_space<vmem>>, %arg9: memref<8x128xf32, #tpu.memory_space<vmem>>, %arg10: memref<8x8xf32, #tpu.memory_space<vmem>>, %arg11: memref<128x1xf32, #tpu.memory_space<vmem>>) attributes {dimension_semantics = [#tpu.dimension_semantics<arbitrary>, #tpu.dimension_semantics<arbitrary>], iteration_bounds = array<i64: 2, 1>, scalar_prefetch = 0 : i64, scratch_operands = 3 : i64, tpu.core_type = #tpu.core_type<tc>, window_params = [{transform_indices = @transform_0, window_bounds = array<i64: 1, 1>}, {pipeline_mode = #tpu.pipeline_mode<synchronous>, transform_indices = @transform_1, window_bounds = array<i64: 8, 256>}, {pipeline_mode = #tpu.pipeline_mode<synchronous>, transform_indices = @transform_2, window_bounds = array<i64: 8, 128>}, {pipeline_mode = #tpu.pipeline_mode<synchronous>, transform_indices = @transform_3, window_bounds = array<i64: 128, 256>}, {pipeline_mode = #tpu.pipeline_mode<synchronous>, transform_indices = @transform_4, window_bounds = array<i64: 8, 128>}, {pipeline_mode = #tpu.pipeline_mode<synchronous>, transform_indices = @transform_5, window_bounds = array<i64: 1, 1>}, {transform_indices = @transform_6, window_bounds = array<i64: 128, 256>}]} {
    %c0 = arith.constant 0 : index
    %c0_0 = arith.constant 0 : index
    %0 = memref.load %arg2[%c0, %c0_0] : memref<1x1xf32, #tpu.memory_space<smem>>
    %c256_i32 = arith.constant 256 : i32
    %1 = arith.muli %arg1, %c256_i32 : i32
    %2 = tpu.assume_multiple %1, 128 : i32
    %c0_1 = arith.constant 0 : index
    %3 = arith.index_cast %2 : i32 to index
    %4 = vector.load %arg3[%c0_1, %3] : memref<8x256xf32, #tpu.memory_space<vmem>>, vector<8x256xf32>
    %c256_i32_2 = arith.constant 256 : i32
    %5 = arith.muli %arg1, %c256_i32_2 : i32
    %6 = tpu.assume_multiple %5, 128 : i32
    %c0_3 = arith.constant 0 : index
    %7 = arith.index_cast %6 : i32 to index
    %8 = vector.load %arg5[%c0_3, %7] : memref<128x256xf32, #tpu.memory_space<vmem>>, vector<128x256xf32>
    %c0_i32 = arith.constant 0 : i32
    %9 = arith.cmpi eq, %arg0, %c0_i32 : i32
    %10 = arith.extui %9 : i1 to i32
    %c0_i32_4 = arith.constant 0 : i32
    %11 = arith.cmpi ne, %10, %c0_i32_4 : i32
    scf.if %11 {
      %cst = arith.constant dense<0.000000e+00> : vector<8x128xf32>
      %15 = tpu.matmul %4, %8, %cst {dimension_numbers = #tpu.dot_dimension_numbers<[1], [1], [0], [0], [0, 0, 1, 0], [], []>} : vector<8x256xf32>, vector<128x256xf32>, vector<8x128xf32> -> vector<8x128xf32>
      %cst_6 = arith.constant dense<0.000000e+00> : vector<8x8xf32>
      %16 = tpu.matmul %4, %4, %cst_6 {dimension_numbers = #tpu.dot_dimension_numbers<[1], [1], [0], [0], [0, 0, 1, 0], [], []>} : vector<8x256xf32>, vector<8x256xf32>, vector<8x8xf32> -> vector<8x8xf32>
      %c0_i32_7 = arith.constant 0 : i32
      %17 = arith.cmpi eq, %arg1, %c0_i32_7 : i32
      %18 = arith.extui %17 : i1 to i32
      %c0_i32_8 = arith.constant 0 : i32
      %19 = arith.cmpi ne, %18, %c0_i32_8 : i32
      scf.if %19 {
        %c0_13 = arith.constant 0 : index
        %c0_14 = arith.constant 0 : index
        %26 = vector.load %arg4[%c0_13, %c0_14] : memref<8x128xf32, #tpu.memory_space<vmem>>, vector<8x128xf32>
        %27 = arith.addf %26, %15 : vector<8x128xf32>
        %c0_15 = arith.constant 0 : index
        %c0_16 = arith.constant 0 : index
        %28 = vector.load %arg9[%c0_15, %c0_16] : memref<8x128xf32, #tpu.memory_space<vmem>>, vector<8x128xf32>
        tpu.vector_store %arg9[%c0_15, %c0_16], %27 {strides = array<i32>} : memref<8x128xf32, #tpu.memory_space<vmem>>, vector<8x128xf32>,
        %c0_17 = arith.constant 0 : index
        %c0_18 = arith.constant 0 : index
        %29 = vector.load %arg10[%c0_17, %c0_18] : memref<8x8xf32, #tpu.memory_space<vmem>>, vector<8x8xf32>
        tpu.vector_store %arg10[%c0_17, %c0_18], %16 {strides = array<i32>} : memref<8x8xf32, #tpu.memory_space<vmem>>, vector<8x8xf32>,
        %c0_19 = arith.constant 0 : index
        %c0_20 = arith.constant 0 : index
        %30 = vector.load %arg8[%c0_19, %c0_20] : memref<128x256xf32, #tpu.memory_space<vmem>>, vector<128x256xf32>
        tpu.vector_store %arg8[%c0_19, %c0_20], %8 {strides = array<i32>} : memref<128x256xf32, #tpu.memory_space<vmem>>, vector<128x256xf32>,
      } else {
      }
      %c0_i32_9 = arith.constant 0 : i32
      %20 = arith.cmpi sgt, %arg1, %c0_i32_9 : i32
      %21 = arith.extui %20 : i1 to i32
      %c0_i32_10 = arith.constant 0 : i32
      %22 = arith.cmpi ne, %21, %c0_i32_10 : i32
      scf.if %22 {
        %c0_13 = arith.constant 0 : index
        %c0_14 = arith.constant 0 : index
        %26 = vector.load %arg9[%c0_13, %c0_14] : memref<8x128xf32, #tpu.memory_space<vmem>>, vector<8x128xf32>
        %27 = arith.addf %26, %15 : vector<8x128xf32>
        %c0_15 = arith.constant 0 : index
        %c0_16 = arith.constant 0 : index
        %28 = vector.load %arg9[%c0_15, %c0_16] : memref<8x128xf32, #tpu.memory_space<vmem>>, vector<8x128xf32>
        tpu.vector_store %arg9[%c0_15, %c0_16], %27 {strides = array<i32>} : memref<8x128xf32, #tpu.memory_space<vmem>>, vector<8x128xf32>,
        %c0_17 = arith.constant 0 : index
        %c0_18 = arith.constant 0 : index
        %29 = vector.load %arg10[%c0_17, %c0_18] : memref<8x8xf32, #tpu.memory_space<vmem>>, vector<8x8xf32>
        %30 = arith.addf %29, %16 : vector<8x8xf32>
        %c0_19 = arith.constant 0 : index
        %c0_20 = arith.constant 0 : index
        %31 = vector.load %arg10[%c0_19, %c0_20] : memref<8x8xf32, #tpu.memory_space<vmem>>, vector<8x8xf32>
        tpu.vector_store %arg10[%c0_19, %c0_20], %30 {strides = array<i32>} : memref<8x8xf32, #tpu.memory_space<vmem>>, vector<8x8xf32>,
      } else {
      }
      %c0_i32_11 = arith.constant 0 : i32
      %23 = arith.cmpi eq, %arg1, %c0_i32_11 : i32
      %24 = arith.extui %23 : i1 to i32
      %c0_i32_12 = arith.constant 0 : i32
      %25 = arith.cmpi ne, %24, %c0_i32_12 : i32
      scf.if %25 {
        %c0_13 = arith.constant 0 : index
        %c0_14 = arith.constant 0 : index
        %26 = vector.load %arg9[%c0_13, %c0_14] : memref<8x128xf32, #tpu.memory_space<vmem>>, vector<8x128xf32>
        %c0_15 = arith.constant 0 : index
        %c0_16 = arith.constant 0 : index
        %27 = vector.load %arg6[%c0_15, %c0_16] : memref<8x128xf32, #tpu.memory_space<vmem>>, vector<8x128xf32>
        tpu.vector_store %arg6[%c0_15, %c0_16], %26 {strides = array<i32>} : memref<8x128xf32, #tpu.memory_space<vmem>>, vector<8x128xf32>,
        %cst_17 = arith.constant 1.000000e+00 : f32
        %28 = vector.broadcast %cst_17 : f32 to vector<8x1xf32>
        %cst_18 = arith.constant dense<0.000000e+00> : vector<128x1xf32>
        %29 = tpu.matmul %26, %28, %cst_18 {dimension_numbers = #tpu.dot_dimension_numbers<[0], [0], [1], [1], [0, 1, 1, 1], [], []>} : vector<8x128xf32>, vector<8x1xf32>, vector<128x1xf32> -> vector<128x1xf32>
        %cst_19 = arith.constant 1.250000e-01 : f32
        %30 = arith.mulf %0, %cst_19 : f32
        %31 = vector.broadcast %30 : f32 to vector<128x1xf32>
        %32 = arith.mulf %31, %29 : vector<128x1xf32>
        %cst_20 = arith.constant 1.000000e+00 : f32
        %33 = vector.broadcast %cst_20 : f32 to vector<128x1xf32>
        %34 = arith.subf %33, %32 : vector<128x1xf32>
        %c0_21 = arith.constant 0 : index
        %c0_22 = arith.constant 0 : index
        %35 = vector.load %arg11[%c0_21, %c0_22] : memref<128x1xf32, #tpu.memory_space<vmem>>, vector<128x1xf32>
        tpu.vector_store %arg11[%c0_21, %c0_22], %34 {strides = array<i32>} : memref<128x1xf32, #tpu.memory_space<vmem>>, vector<128x1xf32>,
        %c0_23 = arith.constant 0 : index
        %c0_24 = arith.constant 0 : index
        %36 = vector.load %arg4[%c0_23, %c0_24] : memref<8x128xf32, #tpu.memory_space<vmem>>, vector<8x128xf32>
        %37 = arith.subf %26, %36 : vector<8x128xf32>
        %cst_25 = arith.constant dense<0.000000e+00> : vector<128xf32>
        %38 = vector.multi_reduction <add>, %26, %cst_25 [0] : vector<8x128xf32> to vector<128xf32>
        %39 = vector.shape_cast %38 : vector<128xf32> to vector<1x128xf32>
        %c0_26 = arith.constant 0 : index
        %c0_27 = arith.constant 0 : index
        %40 = vector.load %arg10[%c0_26, %c0_27] : memref<8x8xf32, #tpu.memory_space<vmem>>, vector<8x8xf32>
        %cst_28 = arith.constant dense<0.000000e+00> : vector<8x128xf32>
        %41 = tpu.matmul %40, %26, %cst_28 {dimension_numbers = #tpu.dot_dimension_numbers<[1], [0], [0], [1], [0, 0, 1, 1], [], []>} : vector<8x8xf32>, vector<8x128xf32>, vector<8x128xf32> -> vector<8x128xf32>
        %42 = vector.broadcast %39 : vector<1x128xf32> to vector<8x128xf32>
        %43 = arith.mulf %37, %42 : vector<8x128xf32>
        %44 = arith.subf %41, %43 : vector<8x128xf32>
        %cst_29 = arith.constant 1.250000e-01 : f32
        %45 = arith.mulf %0, %cst_29 : f32
        %46 = arith.mulf %45, %45 : f32
        %47 = arith.mulf %44, %44 : vector<8x128xf32>
        %48 = vector.shape_cast %47 : vector<8x128xf32> to vector<1x8x128xf32>
        %cst_30 = arith.constant dense<0.000000e+00> : vector<1xf32>
        %49 = vector.multi_reduction <add>, %48, %cst_30 [1, 2] : vector<1x8x128xf32> to vector<1xf32>
        %50 = vector.shape_cast %49 : vector<1xf32> to vector<1x1x1xf32>
        %51 = vector.extract %50[0, 0, 0] : f32 from vector<1x1x1xf32>
        %cst_31 = arith.constant 1.024000e+03 : f32
        %52 = arith.divf %51, %cst_31 : f32
        %53 = arith.mulf %46, %52 : f32
        %54 = vector.broadcast %53 : f32 to vector<1x1xf32>
        %c0_32 = arith.constant 0 : index
        %c0_33 = arith.constant 0 : index
        %55 = vector.load %arg7[%c0_32, %c0_33] : memref<1x1xf32, #tpu.memory_space<vmem>>, vector<1x1xf32>
        tpu.vector_store %arg7[%c0_32, %c0_33], %54 {strides = array<i32>} : memref<1x1xf32, #tpu.memory_space<vmem>>, vector<1x1xf32>,
      } else {
      }
    } else {
    }
    %c1_i32 = arith.constant 1 : i32
    %12 = arith.cmpi eq, %arg0, %c1_i32 : i32
    %13 = arith.extui %12 : i1 to i32
    %c0_i32_5 = arith.constant 0 : i32
    %14 = arith.cmpi ne, %13, %c0_i32_5 : i32
    scf.if %14 {
      %c0_6 = arith.constant 0 : index
      %c0_7 = arith.constant 0 : index
      %15 = vector.load %arg9[%c0_6, %c0_7] : memref<8x128xf32, #tpu.memory_space<vmem>>, vector<8x128xf32>
      %cst = arith.constant dense<0.000000e+00> : vector<128x256xf32>
      %16 = tpu.matmul %15, %4, %cst {dimension_numbers = #tpu.dot_dimension_numbers<[0], [0], [1], [1], [0, 1, 1, 1], [], []>} : vector<8x128xf32>, vector<8x256xf32>, vector<128x256xf32> -> vector<128x256xf32>
      %c0_8 = arith.constant 0 : index
      %c0_9 = arith.constant 0 : index
      %17 = vector.load %arg11[%c0_8, %c0_9] : memref<128x1xf32, #tpu.memory_space<vmem>>, vector<128x1xf32>
      %18 = vector.broadcast %17 : vector<128x1xf32> to vector<128x256xf32>
      %19 = arith.mulf %8, %18 : vector<128x256xf32>
      %cst_10 = arith.constant 1.250000e-01 : f32
      %20 = arith.mulf %0, %cst_10 : f32
      %21 = vector.broadcast %20 : f32 to vector<128x256xf32>
      %22 = arith.mulf %21, %16 : vector<128x256xf32>
      %23 = arith.addf %19, %22 : vector<128x256xf32>
      %c0_11 = arith.constant 0 : index
      %c0_12 = arith.constant 0 : index
      %24 = vector.load %arg8[%c0_11, %c0_12] : memref<128x256xf32, #tpu.memory_space<vmem>>, vector<128x256xf32>
      tpu.vector_store %arg8[%c0_11, %c0_12], %23 {strides = array<i32>} : memref<128x256xf32, #tpu.memory_space<vmem>>, vector<128x256xf32>,
    } else {
    }
    return
  }
  func.func @transform_0(%arg0: i32, %arg1: i32) -> (i32, i32) {
    %c0_i32 = arith.constant 0 : i32
    %c0_i32_0 = arith.constant 0 : i32
    %c0_i32_1 = arith.constant 0 : i32
    return %c0_i32, %c0_i32_0 : i32, i32
  }
  func.func @transform_1(%arg0: i32, %arg1: i32) -> (i32, i32) {
    %c0_i32 = arith.constant 0 : i32
    %c0_i32_0 = arith.constant 0 : i32
    %c0_i32_1 = arith.constant 0 : i32
    return %c0_i32, %c0_i32_0 : i32, i32
  }
  func.func @transform_2(%arg0: i32, %arg1: i32) -> (i32, i32) {
    %c0_i32 = arith.constant 0 : i32
    %c0_i32_0 = arith.constant 0 : i32
    %c0_i32_1 = arith.constant 0 : i32
    return %c0_i32, %c0_i32_0 : i32, i32
  }
  func.func @transform_3(%arg0: i32, %arg1: i32) -> (i32, i32) {
    %c0_i32 = arith.constant 0 : i32
    %c0_i32_0 = arith.constant 0 : i32
    %c0_i32_1 = arith.constant 0 : i32
    return %c0_i32, %c0_i32_0 : i32, i32
  }
  func.func @transform_4(%arg0: i32, %arg1: i32) -> (i32, i32) {
    %c0_i32 = arith.constant 0 : i32
    %c0_i32_0 = arith.constant 0 : i32
    %c0_i32_1 = arith.constant 0 : i32
    return %c0_i32, %c0_i32_0 : i32, i32
  }
  func.func @transform_5(%arg0: i32, %arg1: i32) -> (i32, i32) {
    %c0_i32 = arith.constant 0 : i32
    %c0_i32_0 = arith.constant 0 : i32
    %c0_i32_1 = arith.constant 0 : i32
    return %c0_i32, %c0_i32_0 : i32, i32
  }
  func.func @transform_6(%arg0: i32, %arg1: i32) -> (i32, i32) {
    %0 = arith.muli %arg1, %arg0 : i32
    %c0_i32 = arith.constant 0 : i32
    %c0_i32_0 = arith.constant 0 : i32
    return %c0_i32, %0 : i32, i32
  }
}

</mosaic_0001>

<llo_original>
// kernel: _perforant_call.1
$region0: #{_perforant_call.1}
  #allocation0 [shape = 'u32[]', space=smem, size = 0x4, offset = 0x4, fixed_abs, tag = 'smem constant byte address 0x4 - core index']
  #allocation1 [shape = 'u32[144,128]{1,0:T(1,128)}', space=vmem, size = 0x12000, scoped, tag = 'internal scratch']
  #allocation2 [shape = 'f32[8,128]{1,0:T(8,128)}', space=vmem, size = 0x1000, scoped, tag = 'scratch operand']
  #allocation3 [shape = 'f32[8,8]{1,0:T(8,128)}', space=vmem, size = 0x1000, scoped, tag = 'scratch operand']
  #allocation4 [shape = 'f32[128,1]{1,0:T(8,128)}', space=vmem, size = 0x10000, scoped, tag = 'scratch operand']
  #allocation5 [shape = 'f32[1,1]{1,0:T(1,128)S(6)}', space=smem, size = 0x200, scoped, tag = 'scoped memory for _perforant_call.1']
  %s0 = inlined_call_operand.<no memory space> [shape: f32[1,1], index: 0, kind: input, shape index: {}]
  %s1 = inlined_call_operand.hbm [shape: f32[8,256], index: 1, kind: input, shape index: {}]
  %s2 = inlined_call_operand.hbm [shape: f32[8,128], index: 2, kind: input, shape index: {}]
  %s3 = inlined_call_operand.hbm [shape: f32[128,256], index: 3, kind: input, shape index: {}, may-alias: {3,6}]
  %s4 = inlined_call_operand.hbm [shape: f32[8,128], index: 4, kind: output, shape index: {0}]
  %s5 = inlined_call_operand.hbm [shape: f32[1,1], index: 5, kind: output, shape index: {1}]
  %s6 = inlined_call_operand.hbm [shape: f32[128,256], index: 6, kind: output, shape index: {2}, may-alias: {3,6}]
  %7 = xla_tuple %s4, %s5, %s6
  %s8 = sld [smem:[#allocation0]]
  $region97: #{_perforant_call.1} parent=0
    _
  %s10 = ssub.s32 1, %s8
  %s11 = scalar_select 0, %s10, %s8
  %12 = sst [smem:[#allocation5]] %s0
  $region1: #{_perforant_call.1} parent=0
    #allocation6 [shape = 'u8[8192]{0}', space=vmem, size = 0x2000, scoped, tag = 'input window, operand 1, single buffered']
    #allocation7 [shape = 's32[2]{0}', space=sflag, size = 0x8, scoped, tag = 'scoped memory for _perforant_call.1']
    #allocation8 [shape = 's32[2]{0}', space=sflag, size = 0x8, scoped, tag = 'scoped memory for _perforant_call.1']
    #allocation9 [shape = 'u8[4096]{0}', space=vmem, size = 0x1000, scoped, tag = 'input window, operand 2, single buffered']
    #allocation10 [shape = 's32[1]{0}', space=sflag, size = 0x4, scoped, tag = 'scoped memory for _perforant_call.1']
    #allocation11 [shape = 'u8[131072]{0}', space=vmem, size = 0x20000, scoped, tag = 'input window, operand 3, single buffered']
    #allocation12 [shape = 'u8[4096]{0}', space=vmem, size = 0x1000, scoped, tag = 'output window, operand 0, single buffered']
    #allocation13 [shape = 'u8[512]{0}', space=vmem, size = 0x400, scoped, tag = 'output window, operand 1, single buffered']
    #allocation14 [shape = 's32[1]{0}', space=sflag, size = 0x4, scoped, tag = 'scoped memory for _perforant_call.1']
    #allocation15 [shape = 'u8[262144]{0}', space=vmem, size = 0x40000, scoped, tag = 'output window, operand 2']
    %13 = vsyncpa [#allocation7], 0
    %14 = vsyncpa [#allocation10], 0
    %15 = vsyncpa [#allocation8], 0
    %16 = vsyncpa [#allocation14], 0
    loop: start=0, step=1, limit=4
    $region2: #{_perforant_call.1} parent=1 // loop_pre_header
      _
    $region3: #{_perforant_call.1} parent=1 // loop_header
      %s18 = sphi 0, %s22
      %p19 = scmp.ge.s32.totalorder %s18, 4
      %s25 = sphi 0, %s37
      %s26 = sphi 0, %s33
      %s27 = sphi 0, %s25
      %s28 = sphi 0, %s26
      %s29 = sphi 0, %s27
      %s30 = sphi 0, %s28
      %s38 = sphi 0, %s38
      %s40 = sphi 0, %s38
      %s41 = sphi 0, %s40
      %s55 = sphi 0, %s41
      %s59 = sphi 0, %s59
      %s61 = sphi 0, %s59
      %s62 = sphi 0, %s61
      %s76 = sphi 0, %s62
      %s80 = sphi 0, %s80
      %s82 = sphi 0, %s80
      %s83 = sphi 0, %s82
      %s97 = sphi 0, %s83
      %s101 = sphi 0, %s101
      %s103 = sphi 0, %s101
      %s104 = sphi 0, %s103
      %s118 = sphi 0, %s104
      %s122 = sphi 0, %s122
      %s124 = sphi 0, %s122
      %s125 = sphi 0, %s124
      %s139 = sphi 0, %s125
      %s143 = sphi 0, %s143
      %s145 = sphi 0, %s143
      %s146 = sphi 0, %s145
      %s160 = sphi 0, %s146
      %s168 = sphi 0, %s170
      %s171 = sphi 0, %s168
      %s172 = sphi 0, %s171
      %s188 = sphi 0, %s172
    $region4: #{_perforant_call.1} parent=1 // loop_header_branch
      %21 = sbr.rel (%p19) target = $region8
    $region5: #{_perforant_call.1} parent=1 // loop_body
      %s23 = ssub.s32 %s18, 1
      %s24 = ssub.s32 %s18, 2
      %s31 = sadd.s32 1, %s26
      %p32 = scmp.ge.s32.totalorder %s31, 1
      %s33 = scalar_select %p32, 0, %s31
      %s34 = sadd.s32 1, %s25
      %s35 = scalar_select %p32, %s34, %s25
      %p36 = scmp.ge.s32.totalorder %s35, 2
      %s37 = scalar_select %p36, 0, %s35
      %s39 = sadd.s32 %s38, 1
      %p42 = scmp.eq.s32.totalorder %s18, 1
      %p43 = scmp.ne.s32.totalorder %s38, %s40
      %p44 = scmp.eq.s32.totalorder %s18, 0
      %p45 = por %p43, %p44
      %p46 = scmp.ne.s32.totalorder %s38, %s40
      %p47 = scmp.eq.s32.totalorder %s23, 1
      %p48 = por %p46, %p47
      %p49 = scmp.ne.s32.totalorder %s40, %s41
      %p50 = scmp.eq.s32.totalorder %s23, 0
      %p51 = por %p49, %p50
      %p52 = scmp.ne.s32.totalorder %s40, %s41
      %p53 = scmp.eq.s32.totalorder %s24, 1
      %p54 = por %p52, %p53
      %p56 = scmp.ne.s32.totalorder %s41, %s55
      %p57 = scmp.eq.s32.totalorder %s24, 0
      %p58 = por %p56, %p57
      %s60 = sadd.s32 %s59, 1
      %p63 = scmp.eq.s32.totalorder %s18, 1
      %p64 = scmp.ne.s32.totalorder %s59, %s61
      %p65 = scmp.eq.s32.totalorder %s18, 0
      %p66 = por %p64, %p65
      %p67 = scmp.ne.s32.totalorder %s59, %s61
      %p68 = scmp.eq.s32.totalorder %s23, 1
      %p69 = por %p67, %p68
      %p70 = scmp.ne.s32.totalorder %s61, %s62
      %p71 = scmp.eq.s32.totalorder %s23, 0
      %p72 = por %p70, %p71
      %p73 = scmp.ne.s32.totalorder %s61, %s62
      %p74 = scmp.eq.s32.totalorder %s24, 1
      %p75 = por %p73, %p74
      %p77 = scmp.ne.s32.totalorder %s62, %s76
      %p78 = scmp.eq.s32.totalorder %s24, 0
      %p79 = por %p77, %p78
      %s81 = sadd.s32 %s80, 1
      %p84 = scmp.eq.s32.totalorder %s18, 1
      %p85 = scmp.ne.s32.totalorder %s80, %s82
      %p86 = scmp.eq.s32.totalorder %s18, 0
      %p87 = por %p85, %p86
      %p88 = scmp.ne.s32.totalorder %s80, %s82
      %p89 = scmp.eq.s32.totalorder %s23, 1
      %p90 = por %p88, %p89
      %p91 = scmp.ne.s32.totalorder %s82, %s83
      %p92 = scmp.eq.s32.totalorder %s23, 0
      %p93 = por %p91, %p92
      %p94 = scmp.ne.s32.totalorder %s82, %s83
      %p95 = scmp.eq.s32.totalorder %s24, 1
      %p96 = por %p94, %p95
      %p98 = scmp.ne.s32.totalorder %s83, %s97
      %p99 = scmp.eq.s32.totalorder %s24, 0
      %p100 = por %p98, %p99
      %s102 = sadd.s32 %s101, 1
      %p105 = scmp.eq.s32.totalorder %s18, 1
      %p106 = scmp.ne.s32.totalorder %s101, %s103
      %p107 = scmp.eq.s32.totalorder %s18, 0
      %p108 = por %p106, %p107
      %p109 = scmp.ne.s32.totalorder %s101, %s103
      %p110 = scmp.eq.s32.totalorder %s23, 1
      %p111 = por %p109, %p110
      %p112 = scmp.ne.s32.totalorder %s103, %s104
      %p113 = scmp.eq.s32.totalorder %s23, 0
      %p114 = por %p112, %p113
      %p115 = scmp.ne.s32.totalorder %s103, %s104
      %p116 = scmp.eq.s32.totalorder %s24, 1
      %p117 = por %p115, %p116
      %p119 = scmp.ne.s32.totalorder %s104, %s118
      %p120 = scmp.eq.s32.totalorder %s24, 0
      %p121 = por %p119, %p120
      %s123 = sadd.s32 %s122, 1
      %p126 = scmp.eq.s32.totalorder %s18, 1
      %p127 = scmp.ne.s32.totalorder %s122, %s124
      %p128 = scmp.eq.s32.totalorder %s18, 0
      %p129 = por %p127, %p128
      %p130 = scmp.ne.s32.totalorder %s122, %s124
      %p131 = scmp.eq.s32.totalorder %s23, 1
      %p132 = por %p130, %p131
      %p133 = scmp.ne.s32.totalorder %s124, %s125
      %p134 = scmp.eq.s32.totalorder %s23, 0
      %p135 = por %p133, %p134
      %p136 = scmp.ne.s32.totalorder %s124, %s125
      %p137 = scmp.eq.s32.totalorder %s24, 1
      %p138 = por %p136, %p137
      %p140 = scmp.ne.s32.totalorder %s125, %s139
      %p141 = scmp.eq.s32.totalorder %s24, 0
      %p142 = por %p140, %p141
      %s144 = sadd.s32 %s143, 1
      %p147 = scmp.eq.s32.totalorder %s18, 1
      %p148 = scmp.ne.s32.totalorder %s143, %s145
      %p149 = scmp.eq.s32.totalorder %s18, 0
      %p150 = por %p148, %p149
      %p151 = scmp.ne.s32.totalorder %s143, %s145
      %p152 = scmp.eq.s32.totalorder %s23, 1
      %p153 = por %p151, %p152
      %p154 = scmp.ne.s32.totalorder %s145, %s146
      %p155 = scmp.eq.s32.totalorder %s23, 0
      %p156 = por %p154, %p155
      %p157 = scmp.ne.s32.totalorder %s145, %s146
      %p158 = scmp.eq.s32.totalorder %s24, 1
      %p159 = por %p157, %p158
      %p161 = scmp.ne.s32.totalorder %s146, %s160
      %p162 = scmp.eq.s32.totalorder %s24, 0
      %p163 = por %p161, %p162
      %s164 = smul.u32 %s26, %s25
      %s165 = smul.u32 %s33, %s37
      %s166 = ssub.s32 %s164, %s165
      %p167 = scmp.eq.s32.totalorder %s166, 0
      %s169 = sadd.s32 %s168, 1
      %s170 = scalar_select %p167, %s168, %s169
      %p173 = pneg %p167
      %p174 = scmp.eq.s32.totalorder %s18, 1
      %p175 = por %p173, %p174
      %p176 = scmp.ne.s32.totalorder %s168, %s171
      %p177 = scmp.eq.s32.totalorder %s18, 0
      %p178 = por %p176, %p177
      %p179 = scmp.ne.s32.totalorder %s168, %s171
      %p180 = scmp.eq.s32.totalorder %s23, 1
      %p181 = por %p179, %p180
      %p182 = scmp.ne.s32.totalorder %s171, %s172
      %p183 = scmp.eq.s32.totalorder %s23, 0
      %p184 = por %p182, %p183
      %p185 = scmp.ne.s32.totalorder %s171, %s172
      %p186 = scmp.eq.s32.totalorder %s24, 1
      %p187 = por %p185, %p186
      %p189 = scmp.ne.s32.totalorder %s172, %s188
      %p190 = scmp.eq.s32.totalorder %s24, 0
      %p191 = por %p189, %p190
      %p192 = scmp.le.s32.totalorder 1, %s18
      %p193 = scmp.lt.s32.totalorder %s18, 3
      %p194 = pnand %p192, %p193
      %p195 = pneg %p194
      // Predicated region
      $region9: #{_perforant_call.1} parent=5 // pred_check
        _
      $region10: #{_perforant_call.1} parent=5 // pred_check_branch
        %197 = sbr.rel (%p194) target = $region12
      $region11: #{_perforant_call.1} parent=5 // pred_region
        %s198 = ssub.s32 %s18, 1
        // Predicated region
        $region13: #{_perforant_call.1} parent=11 // pred_check
          %p199 = pneg %p51
        $region14: #{_perforant_call.1} parent=11 // pred_check_branch
          %201 = sbr.rel (%p199) target = $region16
        $region15: #{_perforant_call.1} parent=11 // pred_region
          _
        $region16: #{_perforant_call.1} parent=11 // pred_fallthru
          _
        // Predicated region
        $region17: #{_perforant_call.1} parent=11 // pred_check
          %p202 = pneg %p72
        $region18: #{_perforant_call.1} parent=11 // pred_check_branch
          %204 = sbr.rel (%p202) target = $region20
        $region19: #{_perforant_call.1} parent=11 // pred_region
          %s206 = ssub.s32 256, 256
          %207 = vsyncadd [#allocation7], %s206
          %s209 = sshll.u32 [#allocation6], 4
          %s210 = int_to_ptr.vmem [resolvable:$true] %s209
          %212 = dma.hbm_to_vmem [thread:$0]  %s1, 256, %s210, [#allocation7]
        $region20: #{_perforant_call.1} parent=11 // pred_fallthru
          _
        // Predicated region
        $region21: #{_perforant_call.1} parent=11 // pred_check
          %p213 = pneg %p93
        $region22: #{_perforant_call.1} parent=11 // pred_check_branch
          %215 = sbr.rel (%p213) target = $region24
        $region23: #{_perforant_call.1} parent=11 // pred_region
          %s217 = ssub.s32 128, 128
          %218 = vsyncadd [#allocation10], %s217
          %s220 = sshll.u32 [#allocation9], 4
          %s221 = int_to_ptr.vmem [resolvable:$true] %s220
          %223 = dma.hbm_to_vmem [thread:$0]  %s2, 128, %s221, [#allocation10]
        $region24: #{_perforant_call.1} parent=11 // pred_fallthru
          _
        // Predicated region
        $region25: #{_perforant_call.1} parent=11 // pred_check
          %p224 = pneg %p114
        $region26: #{_perforant_call.1} parent=11 // pred_check_branch
          %226 = sbr.rel (%p224) target = $region28
        $region27: #{_perforant_call.1} parent=11 // pred_region
          %s228 = ssub.s32 4096, 4096
          %229 = vsyncadd [#allocation10], %s228
          %s230 = sshll.u32 [#allocation11], 4
          %s231 = int_to_ptr.vmem [resolvable:$true] %s230
          %236 = dma.hbm_to_vmem [thread:$0]  %s3, 4096, %s231, [#allocation10], 256, 256, 16
        $region28: #{_perforant_call.1} parent=11 // pred_fallthru
          _
      $region12: #{_perforant_call.1} parent=5 // pred_fallthru
        _
      %p237 = scmp.lt.s32.totalorder %s18, 2
      // Predicated region
      $region29: #{_perforant_call.1} parent=5 // pred_check
        %p238 = pneg %p237
      $region30: #{_perforant_call.1} parent=5 // pred_check_branch
        %240 = sbr.rel (%p238) target = $region32
      $region31: #{_perforant_call.1} parent=5 // pred_region
        _
      $region32: #{_perforant_call.1} parent=5 // pred_fallthru
        _
      %p241 = scmp.le.s32.totalorder 1, %s18
      %p242 = scmp.lt.s32.totalorder %s18, 3
      %p243 = pnand %p241, %p242
      %p244 = pneg %p243
      // Predicated region
      $region33: #{_perforant_call.1} parent=5 // pred_check
        _
      $region34: #{_perforant_call.1} parent=5 // pred_check_branch
        %246 = sbr.rel (%p243) target = $region36
      $region35: #{_perforant_call.1} parent=5 // pred_region
        %s247 = ssub.s32 %s18, 1
        // Predicated region
        $region37: #{_perforant_call.1} parent=35 // pred_check
          %p248 = pneg %p72
        $region38: #{_perforant_call.1} parent=35 // pred_check_branch
          %250 = sbr.rel (%p248) target = $region40
        $region39: #{_perforant_call.1} parent=35 // pred_region
          %251 = dma.done [#allocation7], 256
        $region40: #{_perforant_call.1} parent=35 // pred_fallthru
          _
        // Predicated region
        $region41: #{_perforant_call.1} parent=35 // pred_check
          %p252 = pneg %p93
        $region42: #{_perforant_call.1} parent=35 // pred_check_branch
          %254 = sbr.rel (%p252) target = $region44
        $region43: #{_perforant_call.1} parent=35 // pred_region
          %255 = dma.done [#allocation10], 128
        $region44: #{_perforant_call.1} parent=35 // pred_fallthru
          _
        // Predicated region
        $region45: #{_perforant_call.1} parent=35 // pred_check
          %p256 = pneg %p114
        $region46: #{_perforant_call.1} parent=35 // pred_check_branch
          %258 = sbr.rel (%p256) target = $region48
        $region47: #{_perforant_call.1} parent=35 // pred_region
          %259 = dma.done [#allocation10], 4096
        $region48: #{_perforant_call.1} parent=35 // pred_fallthru
          _
        %p260 = pneg %p51
        %p261 = pneg %p48
        %p262 = pneg %p72
        %p263 = pneg %p69
        %p264 = pneg %p93
        %p265 = pneg %p90
        %p266 = pneg %p114
        %p267 = pneg %p111
        %p268 = pneg %p135
        %p269 = pneg %p132
        %p270 = pneg %p156
        %p271 = pneg %p153
        %p272 = pneg %p184
        %p273 = pneg %p181
        %s274 = sand.u32 %s23, 1
        %s275 = scalar_lea.sflag [#allocation8], %s274
        %s276 = sand.u32 %s171, 1
        %s277 = smul.addr %s276, 256
        %s278 = scalar_lea.vmem [#allocation15], %s277
        %s279 = smul.u32 %s28, %s27
        %s280 = smul.u32 2, %s279
        %s281 = sld [smem:[#allocation5]]
        %s282 = smul.u32 %s28, 256
        %s283 = sshra.s32 %s282, 7
        %s284 = sand.u32 %s282, 127
        %s285 = smul.addr %s283, 8
        %s286 = scalar_lea.vmem [#allocation6], %s285
        %v287 = vld [vmem:[%s286] sm:$0xff]
        %v288 = vld [vmem:[%s286 + $0x8] sm:$0xff]
        %s289 = smul.addr %s283, 8
        %s290 = scalar_lea.vmem [#allocation11], %s289
        %v291 = vld [vmem:[%s290] sm:$0xff]
        %v292 = vld [vmem:[%s290 + $0x8] sm:$0xff]
        %v293 = vld [vmem:[%s290 + $0x10] sm:$0xff]
        %v294 = vld [vmem:[%s290 + $0x18] sm:$0xff]
        %v295 = vld [vmem:[%s290 + $0x20] sm:$0xff]
        %v296 = vld [vmem:[%s290 + $0x28] sm:$0xff]
        %v297 = vld [vmem:[%s290 + $0x30] sm:$0xff]
        %v298 = vld [vmem:[%s290 + $0x38] sm:$0xff]
        %v299 = vld [vmem:[%s290 + $0x40] sm:$0xff]
        %v300 = vld [vmem:[%s290 + $0x48] sm:$0xff]
        %v301 = vld [vmem:[%s290 + $0x50] sm:$0xff]
        %v302 = vld [vmem:[%s290 + $0x58] sm:$0xff]
        %v303 = vld [vmem:[%s290 + $0x60] sm:$0xff]
        %v304 = vld [vmem:[%s290 + $0x68] sm:$0xff]
        %v305 = vld [vmem:[%s290 + $0x70] sm:$0xff]
        %v306 = vld [vmem:[%s290 + $0x78] sm:$0xff]
        %v307 = vld [vmem:[%s290 + $0x80] sm:$0xff]
        %v308 = vld [vmem:[%s290 + $0x88] sm:$0xff]
        %v309 = vld [vmem:[%s290 + $0x90] sm:$0xff]
        %v310 = vld [vmem:[%s290 + $0x98] sm:$0xff]
        %v311 = vld [vmem:[%s290 + $0xa0] sm:$0xff]
        %v312 = vld [vmem:[%s290 + $0xa8] sm:$0xff]
        %v313 = vld [vmem:[%s290 + $0xb0] sm:$0xff]
        %v314 = vld [vmem:[%s290 + $0xb8] sm:$0xff]
        %v315 = vld [vmem:[%s290 + $0xc0] sm:$0xff]
        %v316 = vld [vmem:[%s290 + $0xc8] sm:$0xff]
        %v317 = vld [vmem:[%s290 + $0xd0] sm:$0xff]
        %v318 = vld [vmem:[%s290 + $0xd8] sm:$0xff]
        %v319 = vld [vmem:[%s290 + $0xe0] sm:$0xff]
        %v320 = vld [vmem:[%s290 + $0xe8] sm:$0xff]
        %v321 = vld [vmem:[%s290 + $0xf0] sm:$0xff]
        %v322 = vld [vmem:[%s290 + $0xf8] sm:$0xff]
        %p323 = scmp.eq.s32.totalorder %s27, 0
        // Predicated region
        $region49: #{_perforant_call.1} parent=35 // pred_check
          %p324 = pneg %p323
        $region50: #{_perforant_call.1} parent=35 // pred_check_branch
          %326 = sbr.rel (%p324) target = $region52
        $region51: #{_perforant_call.1} parent=35 // pred_region
          %327 = vmatprep.subr.mxu0 %v292
          %328 = vmatpush1.xpose.msra.mxu0 %v291
          %329 = vmatprep.subr.mxu0 %v294
          %330 = vmatpush1.xpose.msra.mxu0 %v293
          %331 = vmatprep.subr.mxu0 %v296
          %332 = vmatpush1.xpose.msra.mxu0 %v295
          %333 = vmatprep.subr.mxu0 %v298
          %334 = vmatpush1.xpose.msra.mxu0 %v297
          %335 = vmatprep.subr.mxu0 %v300
          %336 = vmatpush1.xpose.msra.mxu0 %v299
          %337 = vmatprep.subr.mxu0 %v302
          %338 = vmatpush1.xpose.msra.mxu0 %v301
          %339 = vmatprep.subr.mxu0 %v304
          %340 = vmatpush1.xpose.msra.mxu0 %v303
          %341 = vmatprep.subr.mxu0 %v306
          %342 = vmatpush1.xpose.msra.mxu0 %v305
          %343 = vmatprep.subr.mxu0 %v308
          %344 = vmatpush1.xpose.msra.mxu0 %v307
          %345 = vmatprep.subr.mxu0 %v310
          %346 = vmatpush1.xpose.msra.mxu0 %v309
          %347 = vmatprep.subr.mxu0 %v312
          %348 = vmatpush1.xpose.msra.mxu0 %v311
          %349 = vmatprep.subr.mxu0 %v314
          %350 = vmatpush1.xpose.msra.mxu0 %v313
          %351 = vmatprep.subr.mxu0 %v316
          %352 = vmatpush1.xpose.msra.mxu0 %v315
          %353 = vmatprep.subr.mxu0 %v318
          %354 = vmatpush1.xpose.msra.mxu0 %v317
          %355 = vmatprep.subr.mxu0 %v320
          %356 = vmatpush1.xpose.msra.mxu0 %v319
          %357 = vmatprep.subr.mxu0 %v322
          %358 = vmatpush1.xpose.msra.mxu0 %v321
          %359 = vmatprep.subr.mxu0 0.0
          %360 = vmatpush1.xpose.msra.mxu0 0.0
          %361 = vmatprep.subr.mxu0 0.0
          %362 = vmatpush1.xpose.msra.mxu0 0.0
          %363 = vmatprep.subr.mxu0 0.0
          %364 = vmatpush1.xpose.msra.mxu0 0.0
          %365 = vmatprep.subr.mxu0 0.0
          %366 = vmatpush1.xpose.msra.mxu0 0.0
          %367 = vmatprep.subr.mxu0 0.0
          %368 = vmatpush1.xpose.msra.mxu0 0.0
          %369 = vmatprep.subr.mxu0 0.0
          %370 = vmatpush1.xpose.msra.mxu0 0.0
          %371 = vmatprep.subr.mxu0 0.0
          %372 = vmatpush1.xpose.msra.mxu0 0.0
          %373 = vmatprep.subr.mxu0 0.0
          %374 = vmatpush1.xpose.msra.mxu0 0.0
          %375 = vmatprep.subr.mxu0 0.0
          %376 = vmatpush1.xpose.msra.mxu0 0.0
          %377 = vmatprep.subr.mxu0 0.0
          %378 = vmatpush1.xpose.msra.mxu0 0.0
          %379 = vmatprep.subr.mxu0 0.0
          %380 = vmatpush1.xpose.msra.mxu0 0.0
          %381 = vmatprep.subr.mxu0 0.0
          %382 = vmatpush1.xpose.msra.mxu0 0.0
          %383 = vmatprep.subr.mxu0 0.0
          %384 = vmatpush1.xpose.msra.mxu0 0.0
          %385 = vmatprep.subr.mxu0 0.0
          %386 = vmatpush1.xpose.msra.mxu0 0.0
          %387 = vmatprep.subr.mxu0 0.0
          %388 = vmatpush1.xpose.msra.mxu0 0.0
          %389 = vmatprep.subr.mxu0 0.0
          %390 = vmatpush1.xpose.msra.mxu0 0.0
          %391 = vmatprep.mubr.f32.mxu0 %v288
          %392 = vmatmul.mubr.f32.gmra.mrb[0].mxu0 %v287
          %v393 = vpop.f32.mrb[0].mxu0
          %v394 = vadd.f32 0.0, %v393
          %v395 = vpop.f32.mrb[0].mxu0
          %396 = vdwg.mxu0
          %397 = vmatprep.subr.mxu0 %v288
          %398 = vmatpush1.xpose.msra.mxu0 %v287
          %399 = vmatprep.subr.mxu0 0.0
          %400 = vmatpush1.xpose.msra.mxu0 0.0
          %401 = vmatprep.subr.mxu0 0.0
          %402 = vmatpush1.xpose.msra.mxu0 0.0
          %403 = vmatprep.subr.mxu0 0.0
          %404 = vmatpush1.xpose.msra.mxu0 0.0
          %405 = vmatprep.subr.mxu0 0.0
          %406 = vmatpush1.xpose.msra.mxu0 0.0
          %407 = vmatprep.subr.mxu0 0.0
          %408 = vmatpush1.xpose.msra.mxu0 0.0
          %409 = vmatprep.subr.mxu0 0.0
          %410 = vmatpush1.xpose.msra.mxu0 0.0
          %411 = vmatprep.subr.mxu0 0.0
          %412 = vmatpush1.xpose.msra.mxu0 0.0
          %413 = vmatprep.subr.mxu0 0.0
          %414 = vmatpush1.xpose.msra.mxu0 0.0
          %415 = vmatprep.subr.mxu0 0.0
          %416 = vmatpush1.xpose.msra.mxu0 0.0
          %417 = vmatprep.subr.mxu0 0.0
          %418 = vmatpush1.xpose.msra.mxu0 0.0
          %419 = vmatprep.subr.mxu0 0.0
          %420 = vmatpush1.xpose.msra.mxu0 0.0
          %421 = vmatprep.subr.mxu0 0.0
          %422 = vmatpush1.xpose.msra.mxu0 0.0
          %423 = vmatprep.subr.mxu0 0.0
          %424 = vmatpush1.xpose.msra.mxu0 0.0
          %425 = vmatprep.subr.mxu0 0.0
          %426 = vmatpush1.xpose.msra.mxu0 0.0
          %427 = vmatprep.subr.mxu0 0.0
          %428 = vmatpush1.xpose.msra.mxu0 0.0
          %429 = vmatprep.subr.mxu0 0.0
          %430 = vmatpush1.xpose.msra.mxu0 0.0
          %431 = vmatprep.subr.mxu0 0.0
          %432 = vmatpush1.xpose.msra.mxu0 0.0
          %433 = vmatprep.subr.mxu0 0.0
          %434 = vmatpush1.xpose.msra.mxu0 0.0
          %435 = vmatprep.subr.mxu0 0.0
          %436 = vmatpush1.xpose.msra.mxu0 0.0
          %437 = vmatprep.subr.mxu0 0.0
          %438 = vmatpush1.xpose.msra.mxu0 0.0
          %439 = vmatprep.subr.mxu0 0.0
          %440 = vmatpush1.xpose.msra.mxu0 0.0
          %441 = vmatprep.subr.mxu0 0.0
          %442 = vmatpush1.xpose.msra.mxu0 0.0
          %443 = vmatprep.subr.mxu0 0.0
          %444 = vmatpush1.xpose.msra.mxu0 0.0
          %445 = vmatprep.subr.mxu0 0.0
          %446 = vmatpush1.xpose.msra.mxu0 0.0
          %447 = vmatprep.subr.mxu0 0.0
          %448 = vmatpush1.xpose.msra.mxu0 0.0
          %449 = vmatprep.subr.mxu0 0.0
          %450 = vmatpush1.xpose.msra.mxu0 0.0
          %451 = vmatprep.subr.mxu0 0.0
          %452 = vmatpush1.xpose.msra.mxu0 0.0
          %453 = vmatprep.subr.mxu0 0.0
          %454 = vmatpush1.xpose.msra.mxu0 0.0
          %455 = vmatprep.subr.mxu0 0.0
          %456 = vmatpush1.xpose.msra.mxu0 0.0
          %457 = vmatprep.subr.mxu0 0.0
          %458 = vmatpush1.xpose.msra.mxu0 0.0
          %459 = vmatprep.subr.mxu0 0.0
          %460 = vmatpush1.xpose.msra.mxu0 0.0
          %461 = vmatprep.mubr.f32.mxu0 %v288
          %462 = vmatmul.mubr.f32.gmra.mrb[0].mxu0 %v287
          %v463 = vpop.f32.mrb[0].mxu0
          %v464 = vadd.f32 0.0, %v463
          %v465 = vpop.f32.mrb[0].mxu0
          %466 = vdwg.mxu0
          %p467 = scmp.eq.s32.totalorder %s28, 0
          // Predicated region
          $region53: #{_perforant_call.1} parent=51 // pred_check
            %p468 = pneg %p467
          $region54: #{_perforant_call.1} parent=51 // pred_check_branch
            %470 = sbr.rel (%p468) target = $region56
          $region55: #{_perforant_call.1} parent=51 // pred_region
            %v471 = vld [vmem:[#allocation9] sm:$0xff]
            %v472 = vadd.f32 %v471, %v394
            %473 = vst [vmem:[#allocation2] sm:$0xff] %v472
            %vm474 = vcmask 64512
            %475 = vst.msk [vmem:[#allocation3] sm:$0xff] %vm474, %v464
            %476 = vst [vmem:[%s278] sm:$0xff] %v291
            %477 = vst [vmem:[%s278 + $0x8] sm:$0xff] %v292
            %478 = vst [vmem:[%s278 + $0x10] sm:$0xff] %v293
            %479 = vst [vmem:[%s278 + $0x18] sm:$0xff] %v294
            %480 = vst [vmem:[%s278 + $0x20] sm:$0xff] %v295
            %481 = vst [vmem:[%s278 + $0x28] sm:$0xff] %v296
            %482 = vst [vmem:[%s278 + $0x30] sm:$0xff] %v297
            %483 = vst [vmem:[%s278 + $0x38] sm:$0xff] %v298
            %484 = vst [vmem:[%s278 + $0x40] sm:$0xff] %v299
            %485 = vst [vmem:[%s278 + $0x48] sm:$0xff] %v300
            %486 = vst [vmem:[%s278 + $0x50] sm:$0xff] %v301
            %487 = vst [vmem:[%s278 + $0x58] sm:$0xff] %v302
            %488 = vst [vmem:[%s278 + $0x60] sm:$0xff] %v303
            %489 = vst [vmem:[%s278 + $0x68] sm:$0xff] %v304
            %490 = vst [vmem:[%s278 + $0x70] sm:$0xff] %v305
            %491 = vst [vmem:[%s278 + $0x78] sm:$0xff] %v306
            %492 = vst [vmem:[%s278 + $0x80] sm:$0xff] %v307
            %493 = vst [vmem:[%s278 + $0x88] sm:$0xff] %v308
            %494 = vst [vmem:[%s278 + $0x90] sm:$0xff] %v309
            %495 = vst [vmem:[%s278 + $0x98] sm:$0xff] %v310
            %496 = vst [vmem:[%s278 + $0xa0] sm:$0xff] %v311
            %497 = vst [vmem:[%s278 + $0xa8] sm:$0xff] %v312
            %498 = vst [vmem:[%s278 + $0xb0] sm:$0xff] %v313
            %499 = vst [vmem:[%s278 + $0xb8] sm:$0xff] %v314
            %500 = vst [vmem:[%s278 + $0xc0] sm:$0xff] %v315
            %501 = vst [vmem:[%s278 + $0xc8] sm:$0xff] %v316
            %502 = vst [vmem:[%s278 + $0xd0] sm:$0xff] %v317
            %503 = vst [vmem:[%s278 + $0xd8] sm:$0xff] %v318
            %504 = vst [vmem:[%s278 + $0xe0] sm:$0xff] %v319
            %505 = vst [vmem:[%s278 + $0xe8] sm:$0xff] %v320
            %506 = vst [vmem:[%s278 + $0xf0] sm:$0xff] %v321
            %507 = vst [vmem:[%s278 + $0xf8] sm:$0xff] %v322
          $region56: #{_perforant_call.1} parent=51 // pred_fallthru
            _
          %p508 = scmp.gt.s32.totalorder %s28, 0
          // Predicated region
          $region57: #{_perforant_call.1} parent=51 // pred_check
            %p509 = pneg %p508
          $region58: #{_perforant_call.1} parent=51 // pred_check_branch
            %511 = sbr.rel (%p509) target = $region60
          $region59: #{_perforant_call.1} parent=51 // pred_region
            %v512 = vld [vmem:[#allocation2] sm:$0xff]
            %v513 = vadd.f32 %v512, %v394
            %514 = vst [vmem:[#allocation2] sm:$0xff] %v513
            %v515 = vld [vmem:[#allocation3] sm:$0xff]
            %v516 = vadd.f32 %v515, %v464
            %vm517 = vcmask 64512
            %518 = vst.msk [vmem:[#allocation3] sm:$0xff] %vm517, %v516
          $region60: #{_perforant_call.1} parent=51 // pred_fallthru
            _
          // Predicated region
          $region61: #{_perforant_call.1} parent=51 // pred_check
            %p519 = pneg %p467
          $region62: #{_perforant_call.1} parent=51 // pred_check_branch
            %521 = sbr.rel (%p519) target = $region64
          $region63: #{_perforant_call.1} parent=51 // pred_region
            %v522 = vld [vmem:[#allocation2] sm:$0xff]
            %523 = vst [vmem:[#allocation12] sm:$0xff] %v522
            %524 = vxpose.xlu0.b32.start [1/16] %v522, 128
            %525 = vxpose.xlu0.b32.cont [2/16] 0.0, 128
            %526 = vxpose.xlu0.b32.cont [3/16] 0.0, 128
            %527 = vxpose.xlu0.b32.cont [4/16] 0.0, 128
            %528 = vxpose.xlu0.b32.cont [5/16] 0.0, 128
            %529 = vxpose.xlu0.b32.cont [6/16] 0.0, 128
            %530 = vxpose.xlu0.b32.cont [7/16] 0.0, 128
            %531 = vxpose.xlu0.b32.cont [8/16] 0.0, 128
            %532 = vxpose.xlu0.b32.cont [9/16] 0.0, 128
            %533 = vxpose.xlu0.b32.cont [10/16] 0.0, 128
            %534 = vxpose.xlu0.b32.cont [11/16] 0.0, 128
            %535 = vxpose.xlu0.b32.cont [12/16] 0.0, 128
            %536 = vxpose.xlu0.b32.cont [13/16] 0.0, 128
            %537 = vxpose.xlu0.b32.cont [14/16] 0.0, 128
            %538 = vxpose.xlu0.b32.cont [15/16] 0.0, 128
            %539 = vxpose.xlu0.b32.end [16/16] 0.0, 128
            %v540 = vpop.trf.xlu0
            %v541 = vpop.trf.xlu0
            %v542 = vpop.trf.xlu0
            %v543 = vpop.trf.xlu0
            %v544 = vpop.trf.xlu0
            %v545 = vpop.trf.xlu0
            %v546 = vpop.trf.xlu0
            %v547 = vpop.trf.xlu0
            %v548 = vpop.trf.xlu0
            %v549 = vpop.trf.xlu0
            %v550 = vpop.trf.xlu0
            %v551 = vpop.trf.xlu0
            %v552 = vpop.trf.xlu0
            %v553 = vpop.trf.xlu0
            %v554 = vpop.trf.xlu0
            %v555 = vpop.trf.xlu0
            %vm556 = vcmask 64512
            %v558 = vsel %vm556, %v540, 0
            %v561 = vsel %vm556, %v541, 0
            %v564 = vsel %vm556, %v542, 0
            %v567 = vsel %vm556, %v543, 0
            %v570 = vsel %vm556, %v544, 0
            %v573 = vsel %vm556, %v545, 0
            %v576 = vsel %vm556, %v546, 0
            %v579 = vsel %vm556, %v547, 0
            %v582 = vsel %vm556, %v548, 0
            %v585 = vsel %vm556, %v549, 0
            %v588 = vsel %vm556, %v550, 0
            %v591 = vsel %vm556, %v551, 0
            %v594 = vsel %vm556, %v552, 0
            %v597 = vsel %vm556, %v553, 0
            %v600 = vsel %vm556, %v554, 0
            %v603 = vsel %vm556, %v555, 0
            %605 = vmatprep.subr.mxu0 0.0
            %606 = vmatpush1.msra.mxu0 1.0
            %607 = vmatprep.subr.mxu0 0.0
            %608 = vmatpush1.msra.mxu0 0.0
            %609 = vmatprep.subr.mxu0 0.0
            %610 = vmatpush1.msra.mxu0 0.0
            %611 = vmatprep.subr.mxu0 0.0
            %612 = vmatpush1.msra.mxu0 0.0
            %613 = vmatprep.subr.mxu0 0.0
            %614 = vmatpush1.msra.mxu0 0.0
            %615 = vmatprep.subr.mxu0 0.0
            %616 = vmatpush1.msra.mxu0 0.0
            %617 = vmatprep.subr.mxu0 0.0
            %618 = vmatpush1.msra.mxu0 0.0
            %619 = vmatprep.subr.mxu0 0.0
            %620 = vmatpush1.msra.mxu0 0.0
            %621 = vmatprep.subr.mxu0 0.0
            %622 = vmatpush1.msra.mxu0 0.0
            %623 = vmatprep.subr.mxu0 0.0
            %624 = vmatpush1.msra.mxu0 0.0
            %625 = vmatprep.subr.mxu0 0.0
            %626 = vmatpush1.msra.mxu0 0.0
            %627 = vmatprep.subr.mxu0 0.0
            %628 = vmatpush1.msra.mxu0 0.0
            %629 = vmatprep.subr.mxu0 0.0
            %630 = vmatpush1.msra.mxu0 0.0
            %631 = vmatprep.subr.mxu0 0.0
            %632 = vmatpush1.msra.mxu0 0.0
            %633 = vmatprep.subr.mxu0 0.0
            %634 = vmatpush1.msra.mxu0 0.0
            %635 = vmatprep.subr.mxu0 0.0
            %636 = vmatpush1.msra.mxu0 0.0
            %637 = vmatprep.subr.mxu0 0.0
            %638 = vmatpush1.msra.mxu0 0.0
            %639 = vmatprep.subr.mxu0 0.0
            %640 = vmatpush1.msra.mxu0 0.0
            %641 = vmatprep.subr.mxu0 0.0
            %642 = vmatpush1.msra.mxu0 0.0
            %643 = vmatprep.subr.mxu0 0.0
            %644 = vmatpush1.msra.mxu0 0.0
            %645 = vmatprep.subr.mxu0 0.0
            %646 = vmatpush1.msra.mxu0 0.0
            %647 = vmatprep.subr.mxu0 0.0
            %648 = vmatpush1.msra.mxu0 0.0
            %649 = vmatprep.subr.mxu0 0.0
            %650 = vmatpush1.msra.mxu0 0.0
            %651 = vmatprep.subr.mxu0 0.0
            %652 = vmatpush1.msra.mxu0 0.0
            %653 = vmatprep.subr.mxu0 0.0
            %654 = vmatpush1.msra.mxu0 0.0
            %655 = vmatprep.subr.mxu0 0.0
            %656 = vmatpush1.msra.mxu0 0.0
            %657 = vmatprep.subr.mxu0 0.0
            %658 = vmatpush1.msra.mxu0 0.0
            %659 = vmatprep.subr.mxu0 0.0
            %660 = vmatpush1.msra.mxu0 0.0
            %661 = vmatprep.subr.mxu0 0.0
            %662 = vmatpush1.msra.mxu0 0.0
            %663 = vmatprep.subr.mxu0 0.0
            %664 = vmatpush1.msra.mxu0 0.0
            %665 = vmatprep.subr.mxu0 0.0
            %666 = vmatpush1.msra.mxu0 0.0
            %667 = vmatprep.subr.mxu0 0.0
            %668 = vmatpush1.msra.mxu0 0.0
            %669 = vmatprep.mubr.f32.mxu0 0.0
            %670 = vmatmul.mubr.f32.gmra.mrb[0].mxu0 %v558
            %v671 = vpop.f32.mrb[0].mxu0
            %v672 = vadd.f32 0.0, %v671
            %v673 = vpop.f32.mrb[0].mxu0
            %674 = vmatprep.mubr.f32.mxu0 0.0
            %675 = vmatmul.mubr.f32.gmra.mrb[0].mxu0 %v561
            %v676 = vpop.f32.mrb[0].mxu0
            %v677 = vadd.f32 0.0, %v676
            %v678 = vpop.f32.mrb[0].mxu0
            %679 = vmatprep.mubr.f32.mxu0 0.0
            %680 = vmatmul.mubr.f32.gmra.mrb[0].mxu0 %v564
            %v681 = vpop.f32.mrb[0].mxu0
            %v682 = vadd.f32 0.0, %v681
            %v683 = vpop.f32.mrb[0].mxu0
            %684 = vmatprep.mubr.f32.mxu0 0.0
            %685 = vmatmul.mubr.f32.gmra.mrb[0].mxu0 %v567
            %v686 = vpop.f32.mrb[0].mxu0
            %v687 = vadd.f32 0.0, %v686
            %v688 = vpop.f32.mrb[0].mxu0
            %689 = vmatprep.mubr.f32.mxu0 0.0
            %690 = vmatmul.mubr.f32.gmra.mrb[0].mxu0 %v570
            %v691 = vpop.f32.mrb[0].mxu0
            %v692 = vadd.f32 0.0, %v691
            %v693 = vpop.f32.mrb[0].mxu0
            %694 = vmatprep.mubr.f32.mxu0 0.0
            %695 = vmatmul.mubr.f32.gmra.mrb[0].mxu0 %v573
            %v696 = vpop.f32.mrb[0].mxu0
            %v697 = vadd.f32 0.0, %v696
            %v698 = vpop.f32.mrb[0].mxu0
            %699 = vmatprep.mubr.f32.mxu0 0.0
            %700 = vmatmul.mubr.f32.gmra.mrb[0].mxu0 %v576
            %v701 = vpop.f32.mrb[0].mxu0
            %v702 = vadd.f32 0.0, %v701
            %v703 = vpop.f32.mrb[0].mxu0
            %704 = vmatprep.mubr.f32.mxu0 0.0
            %705 = vmatmul.mubr.f32.gmra.mrb[0].mxu0 %v579
            %v706 = vpop.f32.mrb[0].mxu0
            %v707 = vadd.f32 0.0, %v706
            %v708 = vpop.f32.mrb[0].mxu0
            %709 = vmatprep.mubr.f32.mxu0 0.0
            %710 = vmatmul.mubr.f32.gmra.mrb[0].mxu0 %v582
            %v711 = vpop.f32.mrb[0].mxu0
            %v712 = vadd.f32 0.0, %v711
            %v713 = vpop.f32.mrb[0].mxu0
            %714 = vmatprep.mubr.f32.mxu0 0.0
            %715 = vmatmul.mubr.f32.gmra.mrb[0].mxu0 %v585
            %v716 = vpop.f32.mrb[0].mxu0
            %v717 = vadd.f32 0.0, %v716
            %v718 = vpop.f32.mrb[0].mxu0
            %719 = vmatprep.mubr.f32.mxu0 0.0
            %720 = vmatmul.mubr.f32.gmra.mrb[0].mxu0 %v588
            %v721 = vpop.f32.mrb[0].mxu0
            %v722 = vadd.f32 0.0, %v721
            %v723 = vpop.f32.mrb[0].mxu0
            %724 = vmatprep.mubr.f32.mxu0 0.0
            %725 = vmatmul.mubr.f32.gmra.mrb[0].mxu0 %v591
            %v726 = vpop.f32.mrb[0].mxu0
            %v727 = vadd.f32 0.0, %v726
            %v728 = vpop.f32.mrb[0].mxu0
            %729 = vmatprep.mubr.f32.mxu0 0.0
            %730 = vmatmul.mubr.f32.gmra.mrb[0].mxu0 %v594
            %v731 = vpop.f32.mrb[0].mxu0
            %v732 = vadd.f32 0.0, %v731
            %v733 = vpop.f32.mrb[0].mxu0
            %734 = vmatprep.mubr.f32.mxu0 0.0
            %735 = vmatmul.mubr.f32.gmra.mrb[0].mxu0 %v597
            %v736 = vpop.f32.mrb[0].mxu0
            %v737 = vadd.f32 0.0, %v736
            %v738 = vpop.f32.mrb[0].mxu0
            %739 = vmatprep.mubr.f32.mxu0 0.0
            %740 = vmatmul.mubr.f32.gmra.mrb[0].mxu0 %v600
            %v741 = vpop.f32.mrb[0].mxu0
            %v742 = vadd.f32 0.0, %v741
            %v743 = vpop.f32.mrb[0].mxu0
            %744 = vmatprep.mubr.f32.mxu0 0.0
            %745 = vmatmul.mubr.f32.gmra.mrb[0].mxu0 %v603
            %v746 = vpop.f32.mrb[0].mxu0
            %v747 = vadd.f32 0.0, %v746
            %v748 = vpop.f32.mrb[0].mxu0
            %749 = vdwg.mxu0
            %s750 = smul.f32 %s281, 0.125
            %v751 = vstv %s750
            %v752 = vmul.f32 %v751, %v672
            %v753 = vmul.f32 %v751, %v677
            %v754 = vmul.f32 %v751, %v682
            %v755 = vmul.f32 %v751, %v687
            %v756 = vmul.f32 %v751, %v692
            %v757 = vmul.f32 %v751, %v697
            %v758 = vmul.f32 %v751, %v702
            %v759 = vmul.f32 %v751, %v707
            %v760 = vmul.f32 %v751, %v712
            %v761 = vmul.f32 %v751, %v717
            %v762 = vmul.f32 %v751, %v722
            %v763 = vmul.f32 %v751, %v727
            %v764 = vmul.f32 %v751, %v732
            %v765 = vmul.f32 %v751, %v737
            %v766 = vmul.f32 %v751, %v742
            %v767 = vmul.f32 %v751, %v747
            %v768 = vsub.f32 1.0, %v752
            %v769 = vsub.f32 1.0, %v753
            %v770 = vsub.f32 1.0, %v754
            %v771 = vsub.f32 1.0, %v755
            %v772 = vsub.f32 1.0, %v756
            %v773 = vsub.f32 1.0, %v757
            %v774 = vsub.f32 1.0, %v758
            %v775 = vsub.f32 1.0, %v759
            %v776 = vsub.f32 1.0, %v760
            %v777 = vsub.f32 1.0, %v761
            %v778 = vsub.f32 1.0, %v762
            %v779 = vsub.f32 1.0, %v763
            %v780 = vsub.f32 1.0, %v764
            %v781 = vsub.f32 1.0, %v765
            %v782 = vsub.f32 1.0, %v766
            %v783 = vsub.f32 1.0, %v767
            %vm784 = vcmask 7168
            %785 = vst.msk [vmem:[#allocation4] sm:$0xff] %vm784, %v768
            %786 = vst.msk [vmem:[#allocation4 + $0x8] sm:$0xff] %vm784, %v769
            %787 = vst.msk [vmem:[#allocation4 + $0x10] sm:$0xff] %vm784, %v770
            %788 = vst.msk [vmem:[#allocation4 + $0x18] sm:$0xff] %vm784, %v771
            %789 = vst.msk [vmem:[#allocation4 + $0x20] sm:$0xff] %vm784, %v772
            %790 = vst.msk [vmem:[#allocation4 + $0x28] sm:$0xff] %vm784, %v773
            %791 = vst.msk [vmem:[#allocation4 + $0x30] sm:$0xff] %vm784, %v774
            %792 = vst.msk [vmem:[#allocation4 + $0x38] sm:$0xff] %vm784, %v775
            %793 = vst.msk [vmem:[#allocation4 + $0x40] sm:$0xff] %vm784, %v776
            %794 = vst.msk [vmem:[#allocation4 + $0x48] sm:$0xff] %vm784, %v777
            %795 = vst.msk [vmem:[#allocation4 + $0x50] sm:$0xff] %vm784, %v778
            %796 = vst.msk [vmem:[#allocation4 + $0x58] sm:$0xff] %vm784, %v779
            %797 = vst.msk [vmem:[#allocation4 + $0x60] sm:$0xff] %vm784, %v780
            %798 = vst.msk [vmem:[#allocation4 + $0x68] sm:$0xff] %vm784, %v781
            %799 = vst.msk [vmem:[#allocation4 + $0x70] sm:$0xff] %vm784, %v782
            %800 = vst.msk [vmem:[#allocation4 + $0x78] sm:$0xff] %vm784, %v783
            %v801 = vld [vmem:[#allocation9] sm:$0xff]
            %v802 = vsub.f32 %v522, %v801
            %v803 = vrot.slane %v522, 4
            %v804 = vadd.f32 %v522, %v803
            %v805 = vrot.slane %v804, 2
            %v806 = vadd.f32 %v804, %v805
            %v807 = vrot.slane %v806, 1
            %v808 = vadd.f32 %v806, %v807
            %v809 = vld [vmem:[#allocation3] sm:$0xff]
            %v811 = vsel %vm556, %v809, 0
            %813 = vmatprep.subr.mxu0 0.0
            %814 = vmatpush1.msra.mxu0 %v522
            %815 = vmatprep.subr.mxu0 0.0
            %816 = vmatpush1.msra.mxu0 0.0
            %817 = vmatprep.subr.mxu0 0.0
            %818 = vmatpush1.msra.mxu0 0.0
            %819 = vmatprep.subr.mxu0 0.0
            %820 = vmatpush1.msra.mxu0 0.0
            %821 = vmatprep.subr.mxu0 0.0
            %822 = vmatpush1.msra.mxu0 0.0
            %823 = vmatprep.subr.mxu0 0.0
            %824 = vmatpush1.msra.mxu0 0.0
            %825 = vmatprep.subr.mxu0 0.0
            %826 = vmatpush1.msra.mxu0 0.0
            %827 = vmatprep.subr.mxu0 0.0
            %828 = vmatpush1.msra.mxu0 0.0
            %829 = vmatprep.subr.mxu0 0.0
            %830 = vmatpush1.msra.mxu0 0.0
            %831 = vmatprep.subr.mxu0 0.0
            %832 = vmatpush1.msra.mxu0 0.0
            %833 = vmatprep.subr.mxu0 0.0
            %834 = vmatpush1.msra.mxu0 0.0
            %835 = vmatprep.subr.mxu0 0.0
            %836 = vmatpush1.msra.mxu0 0.0
            %837 = vmatprep.subr.mxu0 0.0
            %838 = vmatpush1.msra.mxu0 0.0
            %839 = vmatprep.subr.mxu0 0.0
            %840 = vmatpush1.msra.mxu0 0.0
            %841 = vmatprep.subr.mxu0 0.0
            %842 = vmatpush1.msra.mxu0 0.0
            %843 = vmatprep.subr.mxu0 0.0
            %844 = vmatpush1.msra.mxu0 0.0
            %845 = vmatprep.subr.mxu0 0.0
            %846 = vmatpush1.msra.mxu0 0.0
            %847 = vmatprep.subr.mxu0 0.0
            %848 = vmatpush1.msra.mxu0 0.0
            %849 = vmatprep.subr.mxu0 0.0
            %850 = vmatpush1.msra.mxu0 0.0
            %851 = vmatprep.subr.mxu0 0.0
            %852 = vmatpush1.msra.mxu0 0.0
            %853 = vmatprep.subr.mxu0 0.0
            %854 = vmatpush1.msra.mxu0 0.0
            %855 = vmatprep.subr.mxu0 0.0
            %856 = vmatpush1.msra.mxu0 0.0
            %857 = vmatprep.subr.mxu0 0.0
            %858 = vmatpush1.msra.mxu0 0.0
            %859 = vmatprep.subr.mxu0 0.0
            %860 = vmatpush1.msra.mxu0 0.0
            %861 = vmatprep.subr.mxu0 0.0
            %862 = vmatpush1.msra.mxu0 0.0
            %863 = vmatprep.subr.mxu0 0.0
            %864 = vmatpush1.msra.mxu0 0.0
            %865 = vmatprep.subr.mxu0 0.0
            %866 = vmatpush1.msra.mxu0 0.0
            %867 = vmatprep.subr.mxu0 0.0
            %868 = vmatpush1.msra.mxu0 0.0
            %869 = vmatprep.subr.mxu0 0.0
            %870 = vmatpush1.msra.mxu0 0.0
            %871 = vmatprep.subr.mxu0 0.0
            %872 = vmatpush1.msra.mxu0 0.0
            %873 = vmatprep.subr.mxu0 0.0
            %874 = vmatpush1.msra.mxu0 0.0
            %875 = vmatprep.subr.mxu0 0.0
            %876 = vmatpush1.msra.mxu0 0.0
            %877 = vmatprep.mubr.f32.mxu0 0.0
            %878 = vmatmul.mubr.f32.gmra.mrb[0].mxu0 %v811
            %v879 = vpop.f32.mrb[0].mxu0
            %v880 = vadd.f32 0.0, %v879
            %v881 = vpop.f32.mrb[0].mxu0
            %882 = vdwg.mxu0
            %v883 = vmul.f32 %v802, %v808
            %v884 = vsub.f32 %v880, %v883
            %s885 = smul.f32 %s750, %s750
            %v886 = vmul.f32 %v884, %v884
            %887 = vadd.xlane.f32.xlu0 %v886
            %v888 = vpop.xlane.xlu0 %887
            %v889 = vrot.slane %v888, 4
            %v890 = vadd.f32 %v888, %v889
            %v891 = vrot.slane %v890, 2
            %v892 = vadd.f32 %v890, %v891
            %v893 = vrot.slane %v892, 1
            %v894 = vadd.f32 %v892, %v893
            %s895 = vtos %v894
            %v896 = vrcp.pop 1024.0
            %s897 = vtos %v896
            %s898 = smul.f32 %s895, %s897
            %s899 = smul.f32 %s885, %s898
            %v900 = vstv %s899
            %vm901 = vcmask 0
            %902 = vst.msk [vmem:[#allocation13] sm:$0x1] %vm901, %v900
          $region64: #{_perforant_call.1} parent=51 // pred_fallthru
            _
        $region52: #{_perforant_call.1} parent=35 // pred_fallthru
          _
        %p903 = scmp.eq.s32.totalorder %s27, 1
        // Predicated region
        $region65: #{_perforant_call.1} parent=35 // pred_check
          %p904 = pneg %p903
        $region66: #{_perforant_call.1} parent=35 // pred_check_branch
          %906 = sbr.rel (%p904) target = $region68
        $region67: #{_perforant_call.1} parent=35 // pred_region
          %v907 = vld [vmem:[#allocation2] sm:$0xff]
          %908 = vxpose.xlu0.b32.start [1/16] %v907, 128
          %909 = vxpose.xlu0.b32.cont [2/16] 0.0, 128
          %910 = vxpose.xlu0.b32.cont [3/16] 0.0, 128
          %911 = vxpose.xlu0.b32.cont [4/16] 0.0, 128
          %912 = vxpose.xlu0.b32.cont [5/16] 0.0, 128
          %913 = vxpose.xlu0.b32.cont [6/16] 0.0, 128
          %914 = vxpose.xlu0.b32.cont [7/16] 0.0, 128
          %915 = vxpose.xlu0.b32.cont [8/16] 0.0, 128
          %916 = vxpose.xlu0.b32.cont [9/16] 0.0, 128
          %917 = vxpose.xlu0.b32.cont [10/16] 0.0, 128
          %918 = vxpose.xlu0.b32.cont [11/16] 0.0, 128
          %919 = vxpose.xlu0.b32.cont [12/16] 0.0, 128
          %920 = vxpose.xlu0.b32.cont [13/16] 0.0, 128
          %921 = vxpose.xlu0.b32.cont [14/16] 0.0, 128
          %922 = vxpose.xlu0.b32.cont [15/16] 0.0, 128
          %923 = vxpose.xlu0.b32.end [16/16] 0.0, 128
          %v924 = vpop.trf.xlu0
          %v925 = vpop.trf.xlu0
          %v926 = vpop.trf.xlu0
          %v927 = vpop.trf.xlu0
          %v928 = vpop.trf.xlu0
          %v929 = vpop.trf.xlu0
          %v930 = vpop.trf.xlu0
          %v931 = vpop.trf.xlu0
          %v932 = vpop.trf.xlu0
          %v933 = vpop.trf.xlu0
          %v934 = vpop.trf.xlu0
          %v935 = vpop.trf.xlu0
          %v936 = vpop.trf.xlu0
          %v937 = vpop.trf.xlu0
          %v938 = vpop.trf.xlu0
          %v939 = vpop.trf.xlu0
          %vm940 = vcmask 64512
          %v942 = vsel %vm940, %v924, 0
          %v945 = vsel %vm940, %v925, 0
          %v948 = vsel %vm940, %v926, 0
          %v951 = vsel %vm940, %v927, 0
          %v954 = vsel %vm940, %v928, 0
          %v957 = vsel %vm940, %v929, 0
          %v960 = vsel %vm940, %v930, 0
          %v963 = vsel %vm940, %v931, 0
          %v966 = vsel %vm940, %v932, 0
          %v969 = vsel %vm940, %v933, 0
          %v972 = vsel %vm940, %v934, 0
          %v975 = vsel %vm940, %v935, 0
          %v978 = vsel %vm940, %v936, 0
          %v981 = vsel %vm940, %v937, 0
          %v984 = vsel %vm940, %v938, 0
          %v987 = vsel %vm940, %v939, 0
          %989 = vmatprep.subr.mxu0 %v288
          %990 = vmatpush1.msra.mxu0 %v287
          %991 = vmatprep.subr.mxu0 0.0
          %992 = vmatpush1.msra.mxu0 0.0
          %993 = vmatprep.subr.mxu0 0.0
          %994 = vmatpush1.msra.mxu0 0.0
          %995 = vmatprep.subr.mxu0 0.0
          %996 = vmatpush1.msra.mxu0 0.0
          %997 = vmatprep.subr.mxu0 0.0
          %998 = vmatpush1.msra.mxu0 0.0
          %999 = vmatprep.subr.mxu0 0.0
          %1000 = vmatpush1.msra.mxu0 0.0
          %1001 = vmatprep.subr.mxu0 0.0
          %1002 = vmatpush1.msra.mxu0 0.0
          %1003 = vmatprep.subr.mxu0 0.0
          %1004 = vmatpush1.msra.mxu0 0.0
          %1005 = vmatprep.subr.mxu0 0.0
          %1006 = vmatpush1.msra.mxu0 0.0
          %1007 = vmatprep.subr.mxu0 0.0
          %1008 = vmatpush1.msra.mxu0 0.0
          %1009 = vmatprep.subr.mxu0 0.0
          %1010 = vmatpush1.msra.mxu0 0.0
          %1011 = vmatprep.subr.mxu0 0.0
          %1012 = vmatpush1.msra.mxu0 0.0
          %1013 = vmatprep.subr.mxu0 0.0
          %1014 = vmatpush1.msra.mxu0 0.0
          %1015 = vmatprep.subr.mxu0 0.0
          %1016 = vmatpush1.msra.mxu0 0.0
          %1017 = vmatprep.subr.mxu0 0.0
          %1018 = vmatpush1.msra.mxu0 0.0
          %1019 = vmatprep.subr.mxu0 0.0
          %1020 = vmatpush1.msra.mxu0 0.0
          %1021 = vmatprep.subr.mxu0 0.0
          %1022 = vmatpush1.msra.mxu0 0.0
          %1023 = vmatprep.subr.mxu0 0.0
          %1024 = vmatpush1.msra.mxu0 0.0
          %1025 = vmatprep.subr.mxu0 0.0
          %1026 = vmatpush1.msra.mxu0 0.0
          %1027 = vmatprep.subr.mxu0 0.0
          %1028 = vmatpush1.msra.mxu0 0.0
          %1029 = vmatprep.subr.mxu0 0.0
          %1030 = vmatpush1.msra.mxu0 0.0
          %1031 = vmatprep.subr.mxu0 0.0
          %1032 = vmatpush1.msra.mxu0 0.0
          %1033 = vmatprep.subr.mxu0 0.0
          %1034 = vmatpush1.msra.mxu0 0.0
          %1035 = vmatprep.subr.mxu0 0.0
          %1036 = vmatpush1.msra.mxu0 0.0
          %1037 = vmatprep.subr.mxu0 0.0
          %1038 = vmatpush1.msra.mxu0 0.0
          %1039 = vmatprep.subr.mxu0 0.0
          %1040 = vmatpush1.msra.mxu0 0.0
          %1041 = vmatprep.subr.mxu0 0.0
          %1042 = vmatpush1.msra.mxu0 0.0
          %1043 = vmatprep.subr.mxu0 0.0
          %1044 = vmatpush1.msra.mxu0 0.0
          %1045 = vmatprep.subr.mxu0 0.0
          %1046 = vmatpush1.msra.mxu0 0.0
          %1047 = vmatprep.subr.mxu0 0.0
          %1048 = vmatpush1.msra.mxu0 0.0
          %1049 = vmatprep.subr.mxu0 0.0
          %1050 = vmatpush1.msra.mxu0 0.0
          %1051 = vmatprep.subr.mxu0 0.0
          %1052 = vmatpush1.msra.mxu0 0.0
          %1053 = vmatprep.mubr.f32.mxu0 0.0
          %1054 = vmatmul.mubr.f32.gmra.mrb[0].mxu0 %v942
          %v1055 = vpop.f32.mrb[0].mxu0
          %v1056 = vadd.f32 0.0, %v1055
          %v1057 = vpop.f32.mrb[0].mxu0
          %v1058 = vadd.f32 0.0, %v1057
          %1059 = vmatprep.mubr.f32.mxu0 0.0
          %1060 = vmatmul.mubr.f32.gmra.mrb[0].mxu0 %v945
          %v1061 = vpop.f32.mrb[0].mxu0
          %v1062 = vadd.f32 0.0, %v1061
          %v1063 = vpop.f32.mrb[0].mxu0
          %v1064 = vadd.f32 0.0, %v1063
          %1065 = vmatprep.mubr.f32.mxu0 0.0
          %1066 = vmatmul.mubr.f32.gmra.mrb[0].mxu0 %v948
          %v1067 = vpop.f32.mrb[0].mxu0
          %v1068 = vadd.f32 0.0, %v1067
          %v1069 = vpop.f32.mrb[0].mxu0
          %v1070 = vadd.f32 0.0, %v1069
          %1071 = vmatprep.mubr.f32.mxu0 0.0
          %1072 = vmatmul.mubr.f32.gmra.mrb[0].mxu0 %v951
          %v1073 = vpop.f32.mrb[0].mxu0
          %v1074 = vadd.f32 0.0, %v1073
          %v1075 = vpop.f32.mrb[0].mxu0
          %v1076 = vadd.f32 0.0, %v1075
          %1077 = vmatprep.mubr.f32.mxu0 0.0
          %1078 = vmatmul.mubr.f32.gmra.mrb[0].mxu0 %v954
          %v1079 = vpop.f32.mrb[0].mxu0
          %v1080 = vadd.f32 0.0, %v1079
          %v1081 = vpop.f32.mrb[0].mxu0
          %v1082 = vadd.f32 0.0, %v1081
          %1083 = vmatprep.mubr.f32.mxu0 0.0
          %1084 = vmatmul.mubr.f32.gmra.mrb[0].mxu0 %v957
          %v1085 = vpop.f32.mrb[0].mxu0
          %v1086 = vadd.f32 0.0, %v1085
          %v1087 = vpop.f32.mrb[0].mxu0
          %v1088 = vadd.f32 0.0, %v1087
          %1089 = vmatprep.mubr.f32.mxu0 0.0
          %1090 = vmatmul.mubr.f32.gmra.mrb[0].mxu0 %v960
          %v1091 = vpop.f32.mrb[0].mxu0
          %v1092 = vadd.f32 0.0, %v1091
          %v1093 = vpop.f32.mrb[0].mxu0
          %v1094 = vadd.f32 0.0, %v1093
          %1095 = vmatprep.mubr.f32.mxu0 0.0
          %1096 = vmatmul.mubr.f32.gmra.mrb[0].mxu0 %v963
          %v1097 = vpop.f32.mrb[0].mxu0
          %v1098 = vadd.f32 0.0, %v1097
          %v1099 = vpop.f32.mrb[0].mxu0
          %v1100 = vadd.f32 0.0, %v1099
          %1101 = vmatprep.mubr.f32.mxu0 0.0
          %1102 = vmatmul.mubr.f32.gmra.mrb[0].mxu0 %v966
          %v1103 = vpop.f32.mrb[0].mxu0
          %v1104 = vadd.f32 0.0, %v1103
          %v1105 = vpop.f32.mrb[0].mxu0
          %v1106 = vadd.f32 0.0, %v1105
          %1107 = vmatprep.mubr.f32.mxu0 0.0
          %1108 = vmatmul.mubr.f32.gmra.mrb[0].mxu0 %v969
          %v1109 = vpop.f32.mrb[0].mxu0
          %v1110 = vadd.f32 0.0, %v1109
          %v1111 = vpop.f32.mrb[0].mxu0
          %v1112 = vadd.f32 0.0, %v1111
          %1113 = vmatprep.mubr.f32.mxu0 0.0
          %1114 = vmatmul.mubr.f32.gmra.mrb[0].mxu0 %v972
          %v1115 = vpop.f32.mrb[0].mxu0
          %v1116 = vadd.f32 0.0, %v1115
          %v1117 = vpop.f32.mrb[0].mxu0
          %v1118 = vadd.f32 0.0, %v1117
          %1119 = vmatprep.mubr.f32.mxu0 0.0
          %1120 = vmatmul.mubr.f32.gmra.mrb[0].mxu0 %v975
          %v1121 = vpop.f32.mrb[0].mxu0
          %v1122 = vadd.f32 0.0, %v1121
          %v1123 = vpop.f32.mrb[0].mxu0
          %v1124 = vadd.f32 0.0, %v1123
          %1125 = vmatprep.mubr.f32.mxu0 0.0
          %1126 = vmatmul.mubr.f32.gmra.mrb[0].mxu0 %v978
          %v1127 = vpop.f32.mrb[0].mxu0
          %v1128 = vadd.f32 0.0, %v1127
          %v1129 = vpop.f32.mrb[0].mxu0
          %v1130 = vadd.f32 0.0, %v1129
          %1131 = vmatprep.mubr.f32.mxu0 0.0
          %1132 = vmatmul.mubr.f32.gmra.mrb[0].mxu0 %v981
          %v1133 = vpop.f32.mrb[0].mxu0
          %v1134 = vadd.f32 0.0, %v1133
          %v1135 = vpop.f32.mrb[0].mxu0
          %v1136 = vadd.f32 0.0, %v1135
          %1137 = vmatprep.mubr.f32.mxu0 0.0
          %1138 = vmatmul.mubr.f32.gmra.mrb[0].mxu0 %v984
          %v1139 = vpop.f32.mrb[0].mxu0
          %v1140 = vadd.f32 0.0, %v1139
          %v1141 = vpop.f32.mrb[0].mxu0
          %v1142 = vadd.f32 0.0, %v1141
          %1143 = vmatprep.mubr.f32.mxu0 0.0
          %1144 = vmatmul.mubr.f32.gmra.mrb[0].mxu0 %v987
          %v1145 = vpop.f32.mrb[0].mxu0
          %v1146 = vadd.f32 0.0, %v1145
          %v1147 = vpop.f32.mrb[0].mxu0
          %v1148 = vadd.f32 0.0, %v1147
          %1149 = vdwg.mxu0
          %v1150 = vld [vmem:[#allocation4] sm:$0xff]
          %v1151 = vld [vmem:[#allocation4 + $0x8] sm:$0xff]
          %v1152 = vld [vmem:[#allocation4 + $0x10] sm:$0xff]
          %v1153 = vld [vmem:[#allocation4 + $0x18] sm:$0xff]
          %v1154 = vld [vmem:[#allocation4 + $0x20] sm:$0xff]
          %v1155 = vld [vmem:[#allocation4 + $0x28] sm:$0xff]
          %v1156 = vld [vmem:[#allocation4 + $0x30] sm:$0xff]
          %v1157 = vld [vmem:[#allocation4 + $0x38] sm:$0xff]
          %v1158 = vld [vmem:[#allocation4 + $0x40] sm:$0xff]
          %v1159 = vld [vmem:[#allocation4 + $0x48] sm:$0xff]
          %v1160 = vld [vmem:[#allocation4 + $0x50] sm:$0xff]
          %v1161 = vld [vmem:[#allocation4 + $0x58] sm:$0xff]
          %v1162 = vld [vmem:[#allocation4 + $0x60] sm:$0xff]
          %v1163 = vld [vmem:[#allocation4 + $0x68] sm:$0xff]
          %v1164 = vld [vmem:[#allocation4 + $0x70] sm:$0xff]
          %v1165 = vld [vmem:[#allocation4 + $0x78] sm:$0xff]
          %1167 = vset.pattern.permute.xlu0 0
          %1168 = vperm.xlu0 %1167, %v1150
          %v1169 = vpop.permute.xlu0 %1168
          %1172 = vset.pattern.permute.xlu0 0
          %1173 = vperm.xlu0 %1172, %v1151
          %v1174 = vpop.permute.xlu0 %1173
          %1177 = vset.pattern.permute.xlu0 0
          %1178 = vperm.xlu0 %1177, %v1152
          %v1179 = vpop.permute.xlu0 %1178
          %1182 = vset.pattern.permute.xlu0 0
          %1183 = vperm.xlu0 %1182, %v1153
          %v1184 = vpop.permute.xlu0 %1183
          %1187 = vset.pattern.permute.xlu0 0
          %1188 = vperm.xlu0 %1187, %v1154
          %v1189 = vpop.permute.xlu0 %1188
          %1192 = vset.pattern.permute.xlu0 0
          %1193 = vperm.xlu0 %1192, %v1155
          %v1194 = vpop.permute.xlu0 %1193
          %1197 = vset.pattern.permute.xlu0 0
          %1198 = vperm.xlu0 %1197, %v1156
          %v1199 = vpop.permute.xlu0 %1198
          %1202 = vset.pattern.permute.xlu0 0
          %1203 = vperm.xlu0 %1202, %v1157
          %v1204 = vpop.permute.xlu0 %1203
          %1207 = vset.pattern.permute.xlu0 0
          %1208 = vperm.xlu0 %1207, %v1158
          %v1209 = vpop.permute.xlu0 %1208
          %1212 = vset.pattern.permute.xlu0 0
          %1213 = vperm.xlu0 %1212, %v1159
          %v1214 = vpop.permute.xlu0 %1213
          %1217 = vset.pattern.permute.xlu0 0
          %1218 = vperm.xlu0 %1217, %v1160
          %v1219 = vpop.permute.xlu0 %1218
          %1222 = vset.pattern.permute.xlu0 0
          %1223 = vperm.xlu0 %1222, %v1161
          %v1224 = vpop.permute.xlu0 %1223
          %1227 = vset.pattern.permute.xlu0 0
          %1228 = vperm.xlu0 %1227, %v1162
          %v1229 = vpop.permute.xlu0 %1228
          %1232 = vset.pattern.permute.xlu0 0
          %1233 = vperm.xlu0 %1232, %v1163
          %v1234 = vpop.permute.xlu0 %1233
          %1237 = vset.pattern.permute.xlu0 0
          %1238 = vperm.xlu0 %1237, %v1164
          %v1239 = vpop.permute.xlu0 %1238
          %1242 = vset.pattern.permute.xlu0 0
          %1243 = vperm.xlu0 %1242, %v1165
          %v1244 = vpop.permute.xlu0 %1243
          %v1246 = vmul.f32 %v291, %v1169
          %v1247 = vmul.f32 %v292, %v1169
          %v1248 = vmul.f32 %v293, %v1174
          %v1249 = vmul.f32 %v294, %v1174
          %v1250 = vmul.f32 %v295, %v1179
          %v1251 = vmul.f32 %v296, %v1179
          %v1252 = vmul.f32 %v297, %v1184
          %v1253 = vmul.f32 %v298, %v1184
          %v1254 = vmul.f32 %v299, %v1189
          %v1255 = vmul.f32 %v300, %v1189
          %v1256 = vmul.f32 %v301, %v1194
          %v1257 = vmul.f32 %v302, %v1194
          %v1258 = vmul.f32 %v303, %v1199
          %v1259 = vmul.f32 %v304, %v1199
          %v1260 = vmul.f32 %v305, %v1204
          %v1261 = vmul.f32 %v306, %v1204
          %v1262 = vmul.f32 %v307, %v1209
          %v1263 = vmul.f32 %v308, %v1209
          %v1264 = vmul.f32 %v309, %v1214
          %v1265 = vmul.f32 %v310, %v1214
          %v1266 = vmul.f32 %v311, %v1219
          %v1267 = vmul.f32 %v312, %v1219
          %v1268 = vmul.f32 %v313, %v1224
          %v1269 = vmul.f32 %v314, %v1224
          %v1270 = vmul.f32 %v315, %v1229
          %v1271 = vmul.f32 %v316, %v1229
          %v1272 = vmul.f32 %v317, %v1234
          %v1273 = vmul.f32 %v318, %v1234
          %v1274 = vmul.f32 %v319, %v1239
          %v1275 = vmul.f32 %v320, %v1239
          %v1276 = vmul.f32 %v321, %v1244
          %v1277 = vmul.f32 %v322, %v1244
          %s1278 = smul.f32 %s281, 0.125
          %v1279 = vstv %s1278
          %v1280 = vmul.f32 %v1279, %v1056
          %v1281 = vmul.f32 %v1279, %v1058
          %v1282 = vmul.f32 %v1279, %v1062
          %v1283 = vmul.f32 %v1279, %v1064
          %v1284 = vmul.f32 %v1279, %v1068
          %v1285 = vmul.f32 %v1279, %v1070
          %v1286 = vmul.f32 %v1279, %v1074
          %v1287 = vmul.f32 %v1279, %v1076
          %v1288 = vmul.f32 %v1279, %v1080
          %v1289 = vmul.f32 %v1279, %v1082
          %v1290 = vmul.f32 %v1279, %v1086
          %v1291 = vmul.f32 %v1279, %v1088
          %v1292 = vmul.f32 %v1279, %v1092
          %v1293 = vmul.f32 %v1279, %v1094
          %v1294 = vmul.f32 %v1279, %v1098
          %v1295 = vmul.f32 %v1279, %v1100
          %v1296 = vmul.f32 %v1279, %v1104
          %v1297 = vmul.f32 %v1279, %v1106
          %v1298 = vmul.f32 %v1279, %v1110
          %v1299 = vmul.f32 %v1279, %v1112
          %v1300 = vmul.f32 %v1279, %v1116
          %v1301 = vmul.f32 %v1279, %v1118
          %v1302 = vmul.f32 %v1279, %v1122
          %v1303 = vmul.f32 %v1279, %v1124
          %v1304 = vmul.f32 %v1279, %v1128
          %v1305 = vmul.f32 %v1279, %v1130
          %v1306 = vmul.f32 %v1279, %v1134
          %v1307 = vmul.f32 %v1279, %v1136
          %v1308 = vmul.f32 %v1279, %v1140
          %v1309 = vmul.f32 %v1279, %v1142
          %v1310 = vmul.f32 %v1279, %v1146
          %v1311 = vmul.f32 %v1279, %v1148
          %v1312 = vadd.f32 %v1246, %v1280
          %v1313 = vadd.f32 %v1247, %v1281
          %v1314 = vadd.f32 %v1248, %v1282
          %v1315 = vadd.f32 %v1249, %v1283
          %v1316 = vadd.f32 %v1250, %v1284
          %v1317 = vadd.f32 %v1251, %v1285
          %v1318 = vadd.f32 %v1252, %v1286
          %v1319 = vadd.f32 %v1253, %v1287
          %v1320 = vadd.f32 %v1254, %v1288
          %v1321 = vadd.f32 %v1255, %v1289
          %v1322 = vadd.f32 %v1256, %v1290
          %v1323 = vadd.f32 %v1257, %v1291
          %v1324 = vadd.f32 %v1258, %v1292
          %v1325 = vadd.f32 %v1259, %v1293
          %v1326 = vadd.f32 %v1260, %v1294
          %v1327 = vadd.f32 %v1261, %v1295
          %v1328 = vadd.f32 %v1262, %v1296
          %v1329 = vadd.f32 %v1263, %v1297
          %v1330 = vadd.f32 %v1264, %v1298
          %v1331 = vadd.f32 %v1265, %v1299
          %v1332 = vadd.f32 %v1266, %v1300
          %v1333 = vadd.f32 %v1267, %v1301
          %v1334 = vadd.f32 %v1268, %v1302
          %v1335 = vadd.f32 %v1269, %v1303
          %v1336 = vadd.f32 %v1270, %v1304
          %v1337 = vadd.f32 %v1271, %v1305
          %v1338 = vadd.f32 %v1272, %v1306
          %v1339 = vadd.f32 %v1273, %v1307
          %v1340 = vadd.f32 %v1274, %v1308
          %v1341 = vadd.f32 %v1275, %v1309
          %v1342 = vadd.f32 %v1276, %v1310
          %v1343 = vadd.f32 %v1277, %v1311
          %1344 = vst [vmem:[%s278] sm:$0xff] %v1312
          %1345 = vst [vmem:[%s278 + $0x8] sm:$0xff] %v1313
          %1346 = vst [vmem:[%s278 + $0x10] sm:$0xff] %v1314
          %1347 = vst [vmem:[%s278 + $0x18] sm:$0xff] %v1315
          %1348 = vst [vmem:[%s278 + $0x20] sm:$0xff] %v1316
          %1349 = vst [vmem:[%s278 + $0x28] sm:$0xff] %v1317
          %1350 = vst [vmem:[%s278 + $0x30] sm:$0xff] %v1318
          %1351 = vst [vmem:[%s278 + $0x38] sm:$0xff] %v1319
          %1352 = vst [vmem:[%s278 + $0x40] sm:$0xff] %v1320
          %1353 = vst [vmem:[%s278 + $0x48] sm:$0xff] %v1321
          %1354 = vst [vmem:[%s278 + $0x50] sm:$0xff] %v1322
          %1355 = vst [vmem:[%s278 + $0x58] sm:$0xff] %v1323
          %1356 = vst [vmem:[%s278 + $0x60] sm:$0xff] %v1324
          %1357 = vst [vmem:[%s278 + $0x68] sm:$0xff] %v1325
          %1358 = vst [vmem:[%s278 + $0x70] sm:$0xff] %v1326
          %1359 = vst [vmem:[%s278 + $0x78] sm:$0xff] %v1327
          %1360 = vst [vmem:[%s278 + $0x80] sm:$0xff] %v1328
          %1361 = vst [vmem:[%s278 + $0x88] sm:$0xff] %v1329
          %1362 = vst [vmem:[%s278 + $0x90] sm:$0xff] %v1330
          %1363 = vst [vmem:[%s278 + $0x98] sm:$0xff] %v1331
          %1364 = vst [vmem:[%s278 + $0xa0] sm:$0xff] %v1332
          %1365 = vst [vmem:[%s278 + $0xa8] sm:$0xff] %v1333
          %1366 = vst [vmem:[%s278 + $0xb0] sm:$0xff] %v1334
          %1367 = vst [vmem:[%s278 + $0xb8] sm:$0xff] %v1335
          %1368 = vst [vmem:[%s278 + $0xc0] sm:$0xff] %v1336
          %1369 = vst [vmem:[%s278 + $0xc8] sm:$0xff] %v1337
          %1370 = vst [vmem:[%s278 + $0xd0] sm:$0xff] %v1338
          %1371 = vst [vmem:[%s278 + $0xd8] sm:$0xff] %v1339
          %1372 = vst [vmem:[%s278 + $0xe0] sm:$0xff] %v1340
          %1373 = vst [vmem:[%s278 + $0xe8] sm:$0xff] %v1341
          %1374 = vst [vmem:[%s278 + $0xf0] sm:$0xff] %v1342
          %1375 = vst [vmem:[%s278 + $0xf8] sm:$0xff] %v1343
        $region68: #{_perforant_call.1} parent=35 // pred_fallthru
          _
        %s1376 = sand.u32 %s23, 1
        %s1377 = scalar_lea.sflag [#allocation8], %s1376
        %s1378 = sand.u32 %s171, 1
        %s1379 = smul.addr %s1378, 256
        %s1380 = scalar_lea.vmem [#allocation15], %s1379
        // Predicated region
        $region69: #{_perforant_call.1} parent=35 // pred_check
          %p1381 = pneg %p132
        $region70: #{_perforant_call.1} parent=35 // pred_check_branch
          %1383 = sbr.rel (%p1381) target = $region72
        $region71: #{_perforant_call.1} parent=35 // pred_region
          %s1385 = ssub.s32 128, 128
          %1386 = vsyncadd [#allocation8], %s1385
          %s1388 = sshll.u32 [#allocation12], 4
          %s1389 = int_to_ptr.vmem [resolvable:$true] %s1388
          %1391 = dma.vmem_to_hbm [thread:$0]  %s1389, 128, %s4, [#allocation8]
        $region72: #{_perforant_call.1} parent=35 // pred_fallthru
          _
        // Predicated region
        $region73: #{_perforant_call.1} parent=35 // pred_check
          %p1392 = pneg %p153
        $region74: #{_perforant_call.1} parent=35 // pred_check_branch
          %1394 = sbr.rel (%p1392) target = $region76
        $region75: #{_perforant_call.1} parent=35 // pred_region
          %s1396 = ssub.s32 16, 16
          %1397 = vsyncadd [#allocation14], %s1396
          %s1399 = sshll.u32 [#allocation13], 4
          %s1400 = int_to_ptr.vmem [resolvable:$true] %s1399
          %1402 = dma.vmem_to_hbm [thread:$0]  %s1400, 16, %s5, [#allocation14]
        $region76: #{_perforant_call.1} parent=35 // pred_fallthru
          _
        // Predicated region
        $region77: #{_perforant_call.1} parent=35 // pred_check
          %p1403 = pneg %p181
        $region78: #{_perforant_call.1} parent=35 // pred_check_branch
          %1405 = sbr.rel (%p1403) target = $region80
        $region79: #{_perforant_call.1} parent=35 // pred_region
          %s1406 = smul.u32 %s28, %s27
          %s1407 = smul.u32 2, %s1406
          %s1409 = ssub.s32 4096, 4096
          %1410 = vsyncadd %s1377, %s1409
          %s1411 = smul.addr %s1407, 128
          %s1412 = scalar_lea.hbm %s6, %s1411
          %s1413 = sshll.u32 %s1380, 4
          %s1414 = int_to_ptr.vmem [resolvable:$true] %s1413
          %1419 = dma.vmem_to_hbm [thread:$0]  %s1414, 4096, %s1412, %s1377, 256, 256, 16
        $region80: #{_perforant_call.1} parent=35 // pred_fallthru
          _
        // Predicated region
        $region81: #{_perforant_call.1} parent=35 // pred_check
          %p1420 = pneg %p132
        $region82: #{_perforant_call.1} parent=35 // pred_check_branch
          %1422 = sbr.rel (%p1420) target = $region84
        $region83: #{_perforant_call.1} parent=35 // pred_region
          %1423 = dma.done [#allocation8], 128
        $region84: #{_perforant_call.1} parent=35 // pred_fallthru
          _
        // Predicated region
        $region85: #{_perforant_call.1} parent=35 // pred_check
          %p1424 = pneg %p153
        $region86: #{_perforant_call.1} parent=35 // pred_check_branch
          %1426 = sbr.rel (%p1424) target = $region88
        $region87: #{_perforant_call.1} parent=35 // pred_region
          %1427 = dma.done [#allocation14], 16
        $region88: #{_perforant_call.1} parent=35 // pred_fallthru
          _
      $region36: #{_perforant_call.1} parent=5 // pred_fallthru
        _
      %p1428 = scmp.le.s32.totalorder 2, %s18
      // Predicated region
      $region89: #{_perforant_call.1} parent=5 // pred_check
        %p1429 = pneg %p1428
      $region90: #{_perforant_call.1} parent=5 // pred_check_branch
        %1431 = sbr.rel (%p1429) target = $region92
      $region91: #{_perforant_call.1} parent=5 // pred_region
        %s1432 = ssub.s32 %s18, 2
        // Predicated region
        $region93: #{_perforant_call.1} parent=91 // pred_check
          %p1433 = pneg %p187
        $region94: #{_perforant_call.1} parent=91 // pred_check_branch
          %1435 = sbr.rel (%p1433) target = $region96
        $region95: #{_perforant_call.1} parent=91 // pred_region
          %s1436 = sand.u32 %s24, 1
          %s1437 = scalar_lea.sflag [#allocation8], %s1436
          %s1438 = sand.u32 %s172, 1
          %s1439 = smul.addr %s1438, 256
          %s1440 = scalar_lea.vmem [#allocation15], %s1439
          %1441 = dma.done %s1437, 4096
        $region96: #{_perforant_call.1} parent=91 // pred_fallthru
          _
      $region92: #{_perforant_call.1} parent=5 // pred_fallthru
        _
    $region6: #{_perforant_call.1} parent=1 // loop_footer
      %s22 = sadd.s32 1, %s18
    $region7: #{_perforant_call.1} parent=1 // loop_footer_branch
      %17 = sbr.rel target = $region3
    $region8: #{_perforant_call.1} parent=1 // loop_exit
      _
    %1442 = vsyncpa [#allocation7], 1
    %s1443 = scalar_lea.sflag [#allocation7], 1
    %1444 = vsyncpa %s1443, 1
    %1445 = vsyncpa [#allocation10], 1
    %1446 = vsyncpa [#allocation8], 1
    %s1447 = scalar_lea.sflag [#allocation8], 1
    %1448 = vsyncpa %s1447, 1
    %1449 = vsyncpa [#allocation14], 1

</llo_original>
